<compile_context>
chip_gen: v7x
topology: tpu7x:2x2x1
jax: 0.10.0
libtpu: 0.0.40
codegen_flags: <defaults>
</compile_context>

<pallas_src>
import functools

import jax
import jax.numpy as jnp
from jax.experimental import pallas as pl
from jax.experimental.pallas import tpu as pltpu

IN_F = 726     # input feature count (not 128-aligned; Mosaic masks the contraction)
HID1 = 1024
HID2 = 256
BLOCK_B = 512  # batch tile; weights stay VMEM-resident across batch tiles


def _mk_kernel(x_ref, w1_ref, b1_ref, w2_ref, b2_ref, o_ref):
    # x_ref : (TM, 726)  f32     w1_ref: (726, 1024) bf16    b1_ref: (1, 1024) f32
    # w2_ref: (1024, 256) bf16   b2_ref: (1, 256)    f32     o_ref : (TM, 256) f32
    x = x_ref[...].astype(jnp.bfloat16)                                   # cast in VMEM (free-ish)
    h1 = jnp.dot(x, w1_ref[...], preferred_element_type=jnp.float32)      # MXU bf16 x bf16 -> f32
    h1 = jnp.maximum(h1 + b1_ref[...], 0.0)                               # relu(input_layer)
    h2 = jnp.dot(h1.astype(jnp.bfloat16), w2_ref[...],
                 preferred_element_type=jnp.float32)
    h2 = jnp.maximum(h2 + b2_ref[...], 0.0)                               # relu(dropout(dense1)); eval dropout = id
    o_ref[...] = h2.astype(o_ref.dtype)


def prepare_params(w1, b1, w2, b2):
    """One-time weight preparation (hoisted out of the forward path).

    PyTorch Linear stores weight as (out, in); transpose to (in, out) and cast to
    bf16 so every forward only moves half the weight bytes and hits MXU peak rate.
    """
    w1_t = jnp.transpose(w1).astype(jnp.bfloat16)    # (726, 1024)
    w2_t = jnp.transpose(w2).astype(jnp.bfloat16)    # (1024, 256)
    b1_2d = b1.reshape(1, HID1).astype(jnp.float32)
    b2_2d = b2.reshape(1, HID2).astype(jnp.float32)
    return w1_t, b1_2d, w2_t, b2_2d


@functools.partial(jax.jit, static_argnames=("block_b",))
def m_k_model_forward(x, w1_t, b1_2d, w2_t, b2_2d, *, block_b=BLOCK_B):
    """x: (B, 726) float32.  Returns out2: (B, 256) float32."""
    B = x.shape[0]
    tm = B if B <= block_b else block_b          # tm == B (full dim) or a multiple-of-8 tile
    grid = (pl.cdiv(B, tm),)

    flops = 2 * B * (IN_F * HID1 + HID1 * HID2)
    bytes_accessed = (x.size * 4 + w1_t.size * 2 + w2_t.size * 2
                      + b1_2d.size * 4 + b2_2d.size * 4 + B * HID2 * 4)

    return pl.pallas_call(
        _mk_kernel,
        out_shape=jax.ShapeDtypeStruct((B, HID2), jnp.float32),
        grid=grid,
        in_specs=[
            pl.BlockSpec((tm, IN_F), lambda i: (i, 0)),      # x tile (pipelined over batch)
            pl.BlockSpec((IN_F, HID1), lambda i: (0, 0)),    # W1: constant index -> VMEM-resident
            pl.BlockSpec((1, HID1), lambda i: (0, 0)),       # b1
            pl.BlockSpec((HID1, HID2), lambda i: (0, 0)),    # W2: constant index -> VMEM-resident
            pl.BlockSpec((1, HID2), lambda i: (0, 0)),       # b2
        ],
        out_specs=pl.BlockSpec((tm, HID2), lambda i: (i, 0)),
        compiler_params=pltpu.CompilerParams(
            dimension_semantics=("parallel",),               # batch tiles independent -> v7x megacore
            vmem_limit_bytes=32 << 20,                       # actual footprint ~10-12 MiB at TM=512
        ),
        cost_estimate=pl.CostEstimate(
            flops=flops, transcendentals=0, bytes_accessed=bytes_accessed),
    )(x, w1_t, b1_2d, w2_t, b2_2d)


def init_params(key):
    """Deterministic PyTorch-style uniform(-1/sqrt(fan_in), 1/sqrt(fan_in)) init (f32 master)."""
    k1, k2, k3, k4 = jax.random.split(key, 4)
    s1 = 1.0 / jnp.sqrt(jnp.float32(IN_F))
    s2 = 1.0 / jnp.sqrt(jnp.float32(HID1))
    w1 = jax.random.uniform(k1, (HID1, IN_F), jnp.float32, -s1, s1)
    b1 = jax.random.uniform(k2, (HID1,), jnp.float32, -s1, s1)
    w2 = jax.random.uniform(k3, (HID2, HID1), jnp.float32, -s2, s2)
    b2 = jax.random.uniform(k4, (HID2,), jnp.float32, -s2, s2)
    # dense_layer2 (256 -> 64) params never affect the returned value; omitted.
    return w1, b1, w2, b2


if __name__ == "__main__":
    key = jax.random.PRNGKey(0)
    pkey, xkey = jax.random.split(key)
    w1, b1, w2, b2 = init_params(pkey)

    # One-time weight prep (outside the per-call path).
    w1_t, b1_2d, w2_t, b2_2d = prepare_params(w1, b1, w2, b2)

    B = 8
    x = jax.random.normal(xkey, (B, IN_F), jnp.float32)

    out = m_k_model_forward(x, w1_t, b1_2d, w2_t, b2_2d)
    jax.block_until_ready(out)
    assert out.shape == (B, HID2)

    # Reference 1: emulate the kernel's numerics (bf16 operands, f32 accumulation).
    xb = x.astype(jnp.bfloat16)
    r1 = jnp.maximum(jnp.dot(xb, w1_t, preferred_element_type=jnp.float32) + b1_2d, 0.0)
    r2 = jnp.maximum(jnp.dot(r1.astype(jnp.bfloat16), w2_t,
                             preferred_element_type=jnp.float32) + b2_2d, 0.0)
    assert jnp.allclose(out, r2, atol=1e-2, rtol=1e-2)

    # Reference 2: full-f32 spec semantics (eval-mode dropout = identity); looser tolerance
    # because weights are intentionally shipped in bf16.
    f1 = jnp.maximum(x @ w1.T + b1, 0.0)
    f2 = jnp.maximum(f1 @ w2.T + b2, 0.0)
    assert jnp.allclose(out, f2, atol=5e-2, rtol=5e-2)

    print("KERNEL_OK")
</pallas_src>

<mosaic_0001>
module attributes {stable_mosaic.version = 11 : i64} {
  func.func @_mk_kernel(%arg0: i32, %arg1: memref<8x726xf32, #tpu.memory_space<vmem>>, %arg2: memref<726x1024xbf16, #tpu.memory_space<vmem>>, %arg3: memref<1x1024xf32, #tpu.memory_space<vmem>>, %arg4: memref<1024x256xbf16, #tpu.memory_space<vmem>>, %arg5: memref<1x256xf32, #tpu.memory_space<vmem>>, %arg6: memref<8x256xf32, #tpu.memory_space<vmem>>) attributes {dimension_semantics = [#tpu.dimension_semantics<parallel>], iteration_bounds = array<i64: 1>, scalar_prefetch = 0 : i64, scratch_operands = 0 : i64, tpu.core_type = #tpu.core_type<tc>, window_params = [{transform_indices = @transform_0, window_bounds = array<i64: 8, 726>}, {pipeline_mode = #tpu.pipeline_mode<synchronous>, transform_indices = @transform_1, window_bounds = array<i64: 726, 1024>}, {pipeline_mode = #tpu.pipeline_mode<synchronous>, transform_indices = @transform_2, window_bounds = array<i64: 1, 1024>}, {pipeline_mode = #tpu.pipeline_mode<synchronous>, transform_indices = @transform_3, window_bounds = array<i64: 1024, 256>}, {pipeline_mode = #tpu.pipeline_mode<synchronous>, transform_indices = @transform_4, window_bounds = array<i64: 1, 256>}, {transform_indices = @transform_5, window_bounds = array<i64: 8, 256>}]} {
    %c0 = arith.constant 0 : index
    %c0_0 = arith.constant 0 : index
    %0 = vector.load %arg1[%c0, %c0_0] : memref<8x726xf32, #tpu.memory_space<vmem>>, vector<8x726xf32>
    %1 = arith.truncf %0 : vector<8x726xf32> to vector<8x726xbf16>
    %c0_1 = arith.constant 0 : index
    %c0_2 = arith.constant 0 : index
    %2 = vector.load %arg2[%c0_1, %c0_2] : memref<726x1024xbf16, #tpu.memory_space<vmem>>, vector<726x1024xbf16>
    %cst = arith.constant dense<0.000000e+00> : vector<8x1024xf32>
    %3 = tpu.matmul %1, %2, %cst {dimension_numbers = #tpu.dot_dimension_numbers<[1], [0], [0], [1], [0, 0, 1, 1], [], []>} : vector<8x726xbf16>, vector<726x1024xbf16>, vector<8x1024xf32> -> vector<8x1024xf32>
    %c0_3 = arith.constant 0 : index
    %c0_4 = arith.constant 0 : index
    %4 = vector.load %arg3[%c0_3, %c0_4] : memref<1x1024xf32, #tpu.memory_space<vmem>>, vector<1x1024xf32>
    %5 = vector.broadcast %4 : vector<1x1024xf32> to vector<8x1024xf32>
    %6 = arith.addf %3, %5 : vector<8x1024xf32>
    %cst_5 = arith.constant 0.000000e+00 : f32
    %7 = vector.broadcast %cst_5 : f32 to vector<8x1024xf32>
    %8 = arith.maximumf %6, %7 : vector<8x1024xf32>
    %9 = arith.truncf %8 : vector<8x1024xf32> to vector<8x1024xbf16>
    %c0_6 = arith.constant 0 : index
    %c0_7 = arith.constant 0 : index
    %10 = vector.load %arg4[%c0_6, %c0_7] : memref<1024x256xbf16, #tpu.memory_space<vmem>>, vector<1024x256xbf16>
    %cst_8 = arith.constant dense<0.000000e+00> : vector<8x256xf32>
    %11 = tpu.matmul %9, %10, %cst_8 {dimension_numbers = #tpu.dot_dimension_numbers<[1], [0], [0], [1], [0, 0, 1, 1], [], []>} : vector<8x1024xbf16>, vector<1024x256xbf16>, vector<8x256xf32> -> vector<8x256xf32>
    %c0_9 = arith.constant 0 : index
    %c0_10 = arith.constant 0 : index
    %12 = vector.load %arg5[%c0_9, %c0_10] : memref<1x256xf32, #tpu.memory_space<vmem>>, vector<1x256xf32>
    %13 = vector.broadcast %12 : vector<1x256xf32> to vector<8x256xf32>
    %14 = arith.addf %11, %13 : vector<8x256xf32>
    %cst_11 = arith.constant 0.000000e+00 : f32
    %15 = vector.broadcast %cst_11 : f32 to vector<8x256xf32>
    %16 = arith.maximumf %14, %15 : vector<8x256xf32>
    %c0_12 = arith.constant 0 : index
    %c0_13 = arith.constant 0 : index
    %17 = vector.load %arg6[%c0_12, %c0_13] : memref<8x256xf32, #tpu.memory_space<vmem>>, vector<8x256xf32>
    tpu.vector_store %arg6[%c0_12, %c0_13], %16 {strides = array<i32>} : memref<8x256xf32, #tpu.memory_space<vmem>>, vector<8x256xf32>,
    return
  }
  func.func @transform_0(%arg0: i32) -> (i32, i32) {
    %c0_i32 = arith.constant 0 : i32
    %c0_i32_0 = arith.constant 0 : i32
    return %arg0, %c0_i32 : i32, i32
  }
  func.func @transform_1(%arg0: i32) -> (i32, i32) {
    %c0_i32 = arith.constant 0 : i32
    %c0_i32_0 = arith.constant 0 : i32
    %c0_i32_1 = arith.constant 0 : i32
    return %c0_i32, %c0_i32_0 : i32, i32
  }
  func.func @transform_2(%arg0: i32) -> (i32, i32) {
    %c0_i32 = arith.constant 0 : i32
    %c0_i32_0 = arith.constant 0 : i32
    %c0_i32_1 = arith.constant 0 : i32
    return %c0_i32, %c0_i32_0 : i32, i32
  }
  func.func @transform_3(%arg0: i32) -> (i32, i32) {
    %c0_i32 = arith.constant 0 : i32
    %c0_i32_0 = arith.constant 0 : i32
    %c0_i32_1 = arith.constant 0 : i32
    return %c0_i32, %c0_i32_0 : i32, i32
  }
  func.func @transform_4(%arg0: i32) -> (i32, i32) {
    %c0_i32 = arith.constant 0 : i32
    %c0_i32_0 = arith.constant 0 : i32
    %c0_i32_1 = arith.constant 0 : i32
    return %c0_i32, %c0_i32_0 : i32, i32
  }
  func.func @transform_5(%arg0: i32) -> (i32, i32) {
    %c0_i32 = arith.constant 0 : i32
    %c0_i32_0 = arith.constant 0 : i32
    return %arg0, %c0_i32 : i32, i32
  }
}

</mosaic_0001>

<llo_original>
// kernel: m_k_model_forward.1
$region0: #{m_k_model_forward.1}
  #allocation0 [shape = 'u32[]', space=smem, size = 0x4, offset = 0x4, fixed_abs, tag = 'smem constant byte address 0x4 - core index']
  #allocation1 [shape = 'u32[144,128]{1,0:T(1,128)}', space=vmem, size = 0x12000, scoped, tag = 'internal scratch']
  %s0 = inlined_call_operand.hbm [shape: f32[8,726], index: 0, kind: input, shape index: {}]
  %s1 = inlined_call_operand.hbm [shape: bf16[726,1024], index: 1, kind: input, shape index: {}]
  %s2 = inlined_call_operand.hbm [shape: f32[1,1024], index: 2, kind: input, shape index: {}]
  %s3 = inlined_call_operand.hbm [shape: bf16[1024,256], index: 3, kind: input, shape index: {}]
  %s4 = inlined_call_operand.hbm [shape: f32[1,256], index: 4, kind: input, shape index: {}]
  %s5 = inlined_call_operand.hbm [shape: f32[8,256], index: 5, kind: output, shape index: {}]
  %s6 = sld [smem:[#allocation0]]
  $region50: #{m_k_model_forward.1} parent=0
    _
  %s8 = ssub.s32 1, %s6
  %s9 = scalar_select 0, %s8, %s6
  $region1: #{m_k_model_forward.1} parent=0
    #allocation2 [shape = 'u8[24576]{0}', space=vmem, size = 0x6000, scoped, tag = 'input window, operand 0, single buffered']
    #allocation3 [shape = 's32[1]{0}', space=sflag, size = 0x4, scoped, tag = 'scoped memory for m_k_model_forward.1']
    #allocation4 [shape = 's32[1]{0}', space=sflag, size = 0x4, scoped, tag = 'scoped memory for m_k_model_forward.1']
    #allocation5 [shape = 'u8[1490944]{0}', space=vmem, size = 0x16c000, scoped, tag = 'input window, operand 1, single buffered']
    #allocation6 [shape = 's32[1]{0}', space=sflag, size = 0x4, scoped, tag = 'scoped memory for m_k_model_forward.1']
    #allocation7 [shape = 'u8[4096]{0}', space=vmem, size = 0x1000, scoped, tag = 'input window, operand 2, single buffered']
    #allocation8 [shape = 'u8[524288]{0}', space=vmem, size = 0x80000, scoped, tag = 'input window, operand 3, single buffered']
    #allocation9 [shape = 's32[1]{0}', space=sflag, size = 0x4, scoped, tag = 'scoped memory for m_k_model_forward.1']
    #allocation10 [shape = 'u8[1024]{0}', space=vmem, size = 0x400, scoped, tag = 'input window, operand 4, single buffered']
    #allocation11 [shape = 'u8[8192]{0}', space=vmem, size = 0x2000, scoped, tag = 'output window, operand 0, single buffered']
    %10 = vsyncpa [#allocation3], 0
    %11 = vsyncpa [#allocation6], 0
    %12 = vsyncpa [#allocation9], 0
    %13 = vsyncpa [#allocation4], 0
    // Predicated region
    $region2: #{m_k_model_forward.1} parent=1 // pred_check
      _
    $region3: #{m_k_model_forward.1} parent=1 // pred_check_branch
      %15 = sbr.rel (0) target = $region5
    $region4: #{m_k_model_forward.1} parent=1 // pred_region
      %s17 = ssub.s32 768, 768
      %18 = vsyncadd [#allocation3], %s17
      %s20 = sshll.u32 [#allocation2], 4
      %s21 = int_to_ptr.vmem [resolvable:$true] %s20
      %23 = dma.hbm_to_vmem [thread:$0]  %s0, 768, %s21, [#allocation3]
    $region5: #{m_k_model_forward.1} parent=1 // pred_fallthru
      _
    // Predicated region
    $region6: #{m_k_model_forward.1} parent=1 // pred_check
      _
    $region7: #{m_k_model_forward.1} parent=1 // pred_check_branch
      %25 = sbr.rel (0) target = $region9
    $region8: #{m_k_model_forward.1} parent=1 // pred_region
      %s27 = ssub.s32 46592, 46592
      %28 = vsyncadd [#allocation6], %s27
      %s29 = sshll.u32 [#allocation5], 4
      %s30 = int_to_ptr.vmem [resolvable:$true] %s29
      %35 = dma.hbm_to_vmem [thread:$0]  %s1, 46592, %s30, [#allocation6], 512, 512, 32
    $region9: #{m_k_model_forward.1} parent=1 // pred_fallthru
      _
    // Predicated region
    $region10: #{m_k_model_forward.1} parent=1 // pred_check
      _
    $region11: #{m_k_model_forward.1} parent=1 // pred_check_branch
      %37 = sbr.rel (0) target = $region13
    $region12: #{m_k_model_forward.1} parent=1 // pred_region
      %s39 = ssub.s32 128, 128
      %40 = vsyncadd [#allocation6], %s39
      %s42 = sshll.u32 [#allocation7], 4
      %s43 = int_to_ptr.vmem [resolvable:$true] %s42
      %45 = dma.hbm_to_vmem [thread:$0]  %s2, 128, %s43, [#allocation6]
    $region13: #{m_k_model_forward.1} parent=1 // pred_fallthru
      _
    // Predicated region
    $region14: #{m_k_model_forward.1} parent=1 // pred_check
      _
    $region15: #{m_k_model_forward.1} parent=1 // pred_check_branch
      %47 = sbr.rel (0) target = $region17
    $region16: #{m_k_model_forward.1} parent=1 // pred_region
      %s49 = ssub.s32 16384, 16384
      %50 = vsyncadd [#allocation9], %s49
      %s51 = sshll.u32 [#allocation8], 4
      %s52 = int_to_ptr.vmem [resolvable:$true] %s51
      %57 = dma.hbm_to_vmem [thread:$0]  %s3, 16384, %s52, [#allocation9], 128, 128, 8
    $region17: #{m_k_model_forward.1} parent=1 // pred_fallthru
      _
    // Predicated region
    $region18: #{m_k_model_forward.1} parent=1 // pred_check
      _
    $region19: #{m_k_model_forward.1} parent=1 // pred_check_branch
      %59 = sbr.rel (0) target = $region21
    $region20: #{m_k_model_forward.1} parent=1 // pred_region
      %s61 = ssub.s32 32, 32
      %62 = vsyncadd [#allocation9], %s61
      %s64 = sshll.u32 [#allocation10], 4
      %s65 = int_to_ptr.vmem [resolvable:$true] %s64
      %67 = dma.hbm_to_vmem [thread:$0]  %s4, 32, %s65, [#allocation9]
    $region21: #{m_k_model_forward.1} parent=1 // pred_fallthru
      _
    // Predicated region
    $region22: #{m_k_model_forward.1} parent=1 // pred_check
      _
    $region23: #{m_k_model_forward.1} parent=1 // pred_check_branch
      %69 = sbr.rel (0) target = $region25
    $region24: #{m_k_model_forward.1} parent=1 // pred_region
      %70 = dma.done [#allocation3], 768
    $region25: #{m_k_model_forward.1} parent=1 // pred_fallthru
      _
    // Predicated region
    $region26: #{m_k_model_forward.1} parent=1 // pred_check
      _
    $region27: #{m_k_model_forward.1} parent=1 // pred_check_branch
      %72 = sbr.rel (0) target = $region29
    $region28: #{m_k_model_forward.1} parent=1 // pred_region
      %73 = dma.done [#allocation6], 46592
    $region29: #{m_k_model_forward.1} parent=1 // pred_fallthru
      _
    // Predicated region
    $region30: #{m_k_model_forward.1} parent=1 // pred_check
      _
    $region31: #{m_k_model_forward.1} parent=1 // pred_check_branch
      %75 = sbr.rel (0) target = $region33
    $region32: #{m_k_model_forward.1} parent=1 // pred_region
      %76 = dma.done [#allocation6], 128
    $region33: #{m_k_model_forward.1} parent=1 // pred_fallthru
      _
    // Predicated region
    $region34: #{m_k_model_forward.1} parent=1 // pred_check
      _
    $region35: #{m_k_model_forward.1} parent=1 // pred_check_branch
      %78 = sbr.rel (0) target = $region37
    $region36: #{m_k_model_forward.1} parent=1 // pred_region
      %79 = dma.done [#allocation9], 16384
    $region37: #{m_k_model_forward.1} parent=1 // pred_fallthru
      _
    // Predicated region
    $region38: #{m_k_model_forward.1} parent=1 // pred_check
      _
    $region39: #{m_k_model_forward.1} parent=1 // pred_check_branch
      %81 = sbr.rel (0) target = $region41
    $region40: #{m_k_model_forward.1} parent=1 // pred_region
      %82 = dma.done [#allocation9], 32
    $region41: #{m_k_model_forward.1} parent=1 // pred_fallthru
      _
    %v84 = vld [vmem:[#allocation2] sm:$0xff]
    %v85 = vld [vmem:[#allocation2 + $0x8] sm:$0xff]
    %v86 = vld [vmem:[#allocation2 + $0x10] sm:$0xff]
    %v87 = vld [vmem:[#allocation2 + $0x18] sm:$0xff]
    %v88 = vld [vmem:[#allocation2 + $0x20] sm:$0xff]
    %v89 = vld [vmem:[#allocation2 + $0x28] sm:$0xff]
    %v90 = vpack.c.bf16 %v84, %v84
    %v91 = vpack.c.bf16 %v85, %v85
    %v92 = vpack.c.bf16 %v86, %v86
    %v93 = vpack.c.bf16 %v87, %v87
    %v94 = vpack.c.bf16 %v88, %v88
    %v95 = vpack.c.bf16 %v89, %v89
    %v96 = vld [vmem:[#allocation5] sm:$0xff]
    %v97 = vld [vmem:[#allocation5 + $0x8] sm:$0xff]
    %v98 = vld [vmem:[#allocation5 + $0x10] sm:$0xff]
    %v99 = vld [vmem:[#allocation5 + $0x18] sm:$0xff]
    %v100 = vld [vmem:[#allocation5 + $0x20] sm:$0xff]
    %v101 = vld [vmem:[#allocation5 + $0x28] sm:$0xff]
    %v102 = vld [vmem:[#allocation5 + $0x30] sm:$0xff]
    %v103 = vld [vmem:[#allocation5 + $0x38] sm:$0xff]
    %v104 = vld [vmem:[#allocation5 + $0x40] sm:$0xff]
    %v105 = vld [vmem:[#allocation5 + $0x48] sm:$0xff]
    %v106 = vld [vmem:[#allocation5 + $0x50] sm:$0xff]
    %v107 = vld [vmem:[#allocation5 + $0x58] sm:$0xff]
    %v108 = vld [vmem:[#allocation5 + $0x60] sm:$0xff]
    %v109 = vld [vmem:[#allocation5 + $0x68] sm:$0xff]
    %v110 = vld [vmem:[#allocation5 + $0x70] sm:$0xff]
    %v111 = vld [vmem:[#allocation5 + $0x78] sm:$0xff]
    %v112 = vld [vmem:[#allocation5 + $0x80] sm:$0xff]
    %v113 = vld [vmem:[#allocation5 + $0x88] sm:$0xff]
    %v114 = vld [vmem:[#allocation5 + $0x90] sm:$0xff]
    %v115 = vld [vmem:[#allocation5 + $0x98] sm:$0xff]
    %v116 = vld [vmem:[#allocation5 + $0xa0] sm:$0xff]
    %v117 = vld [vmem:[#allocation5 + $0xa8] sm:$0xff]
    %v118 = vld [vmem:[#allocation5 + $0xb0] sm:$0xff]
    %v119 = vld [vmem:[#allocation5 + $0xb8] sm:$0xff]
    %v120 = vld [vmem:[#allocation5 + $0xc0] sm:$0xff]
    %v121 = vld [vmem:[#allocation5 + $0xc8] sm:$0xff]
    %v122 = vld [vmem:[#allocation5 + $0xd0] sm:$0xff]
    %v123 = vld [vmem:[#allocation5 + $0xd8] sm:$0xff]
    %v124 = vld [vmem:[#allocation5 + $0xe0] sm:$0xff]
    %v125 = vld [vmem:[#allocation5 + $0xe8] sm:$0xff]
    %v126 = vld [vmem:[#allocation5 + $0xf0] sm:$0xff]
    %v127 = vld [vmem:[#allocation5 + $0xf8] sm:$0xff]
    %v128 = vld [vmem:[#allocation5 + $0x100] sm:$0xff]
    %v129 = vld [vmem:[#allocation5 + $0x108] sm:$0xff]
    %v130 = vld [vmem:[#allocation5 + $0x110] sm:$0xff]
    %v131 = vld [vmem:[#allocation5 + $0x118] sm:$0xff]
    %v132 = vld [vmem:[#allocation5 + $0x120] sm:$0xff]
    %v133 = vld [vmem:[#allocation5 + $0x128] sm:$0xff]
    %v134 = vld [vmem:[#allocation5 + $0x130] sm:$0xff]
    %v135 = vld [vmem:[#allocation5 + $0x138] sm:$0xff]
    %v136 = vld [vmem:[#allocation5 + $0x140] sm:$0xff]
    %v137 = vld [vmem:[#allocation5 + $0x148] sm:$0xff]
    %v138 = vld [vmem:[#allocation5 + $0x150] sm:$0xff]
    %v139 = vld [vmem:[#allocation5 + $0x158] sm:$0xff]
    %v140 = vld [vmem:[#allocation5 + $0x160] sm:$0xff]
    %v141 = vld [vmem:[#allocation5 + $0x168] sm:$0xff]
    %v142 = vld [vmem:[#allocation5 + $0x170] sm:$0xff]
    %v143 = vld [vmem:[#allocation5 + $0x178] sm:$0xff]
    %v144 = vld [vmem:[#allocation5 + $0x180] sm:$0xff]
    %v145 = vld [vmem:[#allocation5 + $0x188] sm:$0xff]
    %v146 = vld [vmem:[#allocation5 + $0x190] sm:$0xff]
    %v147 = vld [vmem:[#allocation5 + $0x198] sm:$0xff]
    %v148 = vld [vmem:[#allocation5 + $0x1a0] sm:$0xff]
    %v149 = vld [vmem:[#allocation5 + $0x1a8] sm:$0xff]
    %v150 = vld [vmem:[#allocation5 + $0x1b0] sm:$0xff]
    %v151 = vld [vmem:[#allocation5 + $0x1b8] sm:$0xff]
    %v152 = vld [vmem:[#allocation5 + $0x1c0] sm:$0xff]
    %v153 = vld [vmem:[#allocation5 + $0x1c8] sm:$0xff]
    %v154 = vld [vmem:[#allocation5 + $0x1d0] sm:$0xff]
    %v155 = vld [vmem:[#allocation5 + $0x1d8] sm:$0xff]
    %v156 = vld [vmem:[#allocation5 + $0x1e0] sm:$0xff]
    %v157 = vld [vmem:[#allocation5 + $0x1e8] sm:$0xff]
    %v158 = vld [vmem:[#allocation5 + $0x1f0] sm:$0xff]
    %v159 = vld [vmem:[#allocation5 + $0x1f8] sm:$0xff]
    %v160 = vld [vmem:[#allocation5 + $0x200] sm:$0xff]
    %v161 = vld [vmem:[#allocation5 + $0x208] sm:$0xff]
    %v162 = vld [vmem:[#allocation5 + $0x210] sm:$0xff]
    %v163 = vld [vmem:[#allocation5 + $0x218] sm:$0xff]
    %v164 = vld [vmem:[#allocation5 + $0x220] sm:$0xff]
    %v165 = vld [vmem:[#allocation5 + $0x228] sm:$0xff]
    %v166 = vld [vmem:[#allocation5 + $0x230] sm:$0xff]
    %v167 = vld [vmem:[#allocation5 + $0x238] sm:$0xff]
    %v168 = vld [vmem:[#allocation5 + $0x240] sm:$0xff]
    %v169 = vld [vmem:[#allocation5 + $0x248] sm:$0xff]
    %v170 = vld [vmem:[#allocation5 + $0x250] sm:$0xff]
    %v171 = vld [vmem:[#allocation5 + $0x258] sm:$0xff]
    %v172 = vld [vmem:[#allocation5 + $0x260] sm:$0xff]
    %v173 = vld [vmem:[#allocation5 + $0x268] sm:$0xff]
    %v174 = vld [vmem:[#allocation5 + $0x270] sm:$0xff]
    %v175 = vld [vmem:[#allocation5 + $0x278] sm:$0xff]
    %v176 = vld [vmem:[#allocation5 + $0x280] sm:$0xff]
    %v177 = vld [vmem:[#allocation5 + $0x288] sm:$0xff]
    %v178 = vld [vmem:[#allocation5 + $0x290] sm:$0xff]
    %v179 = vld [vmem:[#allocation5 + $0x298] sm:$0xff]
    %v180 = vld [vmem:[#allocation5 + $0x2a0] sm:$0xff]
    %v181 = vld [vmem:[#allocation5 + $0x2a8] sm:$0xff]
    %v182 = vld [vmem:[#allocation5 + $0x2b0] sm:$0xff]
    %v183 = vld [vmem:[#allocation5 + $0x2b8] sm:$0xff]
    %v184 = vld [vmem:[#allocation5 + $0x2c0] sm:$0xff]
    %v185 = vld [vmem:[#allocation5 + $0x2c8] sm:$0xff]
    %v186 = vld [vmem:[#allocation5 + $0x2d0] sm:$0xff]
    %v187 = vld [vmem:[#allocation5 + $0x2d8] sm:$0xff]
    %v188 = vld [vmem:[#allocation5 + $0x2e0] sm:$0xff]
    %v189 = vld [vmem:[#allocation5 + $0x2e8] sm:$0xff]
    %v190 = vld [vmem:[#allocation5 + $0x2f0] sm:$0xff]
    %v191 = vld [vmem:[#allocation5 + $0x2f8] sm:$0xff]
    %v192 = vld [vmem:[#allocation5 + $0x300] sm:$0xff]
    %v193 = vld [vmem:[#allocation5 + $0x308] sm:$0xff]
    %v194 = vld [vmem:[#allocation5 + $0x310] sm:$0xff]
    %v195 = vld [vmem:[#allocation5 + $0x318] sm:$0xff]
    %v196 = vld [vmem:[#allocation5 + $0x320] sm:$0xff]
    %v197 = vld [vmem:[#allocation5 + $0x328] sm:$0xff]
    %v198 = vld [vmem:[#allocation5 + $0x330] sm:$0xff]
    %v199 = vld [vmem:[#allocation5 + $0x338] sm:$0xff]
    %v200 = vld [vmem:[#allocation5 + $0x340] sm:$0xff]
    %v201 = vld [vmem:[#allocation5 + $0x348] sm:$0xff]
    %v202 = vld [vmem:[#allocation5 + $0x350] sm:$0xff]
    %v203 = vld [vmem:[#allocation5 + $0x358] sm:$0xff]
    %v204 = vld [vmem:[#allocation5 + $0x360] sm:$0xff]
    %v205 = vld [vmem:[#allocation5 + $0x368] sm:$0xff]
    %v206 = vld [vmem:[#allocation5 + $0x370] sm:$0xff]
    %v207 = vld [vmem:[#allocation5 + $0x378] sm:$0xff]
    %v208 = vld [vmem:[#allocation5 + $0x380] sm:$0xff]
    %v209 = vld [vmem:[#allocation5 + $0x388] sm:$0xff]
    %v210 = vld [vmem:[#allocation5 + $0x390] sm:$0xff]
    %v211 = vld [vmem:[#allocation5 + $0x398] sm:$0xff]
    %v212 = vld [vmem:[#allocation5 + $0x3a0] sm:$0xff]
    %v213 = vld [vmem:[#allocation5 + $0x3a8] sm:$0xff]
    %v214 = vld [vmem:[#allocation5 + $0x3b0] sm:$0xff]
    %v215 = vld [vmem:[#allocation5 + $0x3b8] sm:$0xff]
    %v216 = vld [vmem:[#allocation5 + $0x3c0] sm:$0xff]
    %v217 = vld [vmem:[#allocation5 + $0x3c8] sm:$0xff]
    %v218 = vld [vmem:[#allocation5 + $0x3d0] sm:$0xff]
    %v219 = vld [vmem:[#allocation5 + $0x3d8] sm:$0xff]
    %v220 = vld [vmem:[#allocation5 + $0x3e0] sm:$0xff]
    %v221 = vld [vmem:[#allocation5 + $0x3e8] sm:$0xff]
    %v222 = vld [vmem:[#allocation5 + $0x3f0] sm:$0xff]
    %v223 = vld [vmem:[#allocation5 + $0x3f8] sm:$0xff]
    %v224 = vld [vmem:[#allocation5 + $0x400] sm:$0xff]
    %v225 = vld [vmem:[#allocation5 + $0x408] sm:$0xff]
    %v226 = vld [vmem:[#allocation5 + $0x410] sm:$0xff]
    %v227 = vld [vmem:[#allocation5 + $0x418] sm:$0xff]
    %v228 = vld [vmem:[#allocation5 + $0x420] sm:$0xff]
    %v229 = vld [vmem:[#allocation5 + $0x428] sm:$0xff]
    %v230 = vld [vmem:[#allocation5 + $0x430] sm:$0xff]
    %v231 = vld [vmem:[#allocation5 + $0x438] sm:$0xff]
    %v232 = vld [vmem:[#allocation5 + $0x440] sm:$0xff]
    %v233 = vld [vmem:[#allocation5 + $0x448] sm:$0xff]
    %v234 = vld [vmem:[#allocation5 + $0x450] sm:$0xff]
    %v235 = vld [vmem:[#allocation5 + $0x458] sm:$0xff]
    %v236 = vld [vmem:[#allocation5 + $0x460] sm:$0xff]
    %v237 = vld [vmem:[#allocation5 + $0x468] sm:$0xff]
    %v238 = vld [vmem:[#allocation5 + $0x470] sm:$0xff]
    %v239 = vld [vmem:[#allocation5 + $0x478] sm:$0xff]
    %v240 = vld [vmem:[#allocation5 + $0x480] sm:$0xff]
    %v241 = vld [vmem:[#allocation5 + $0x488] sm:$0xff]
    %v242 = vld [vmem:[#allocation5 + $0x490] sm:$0xff]
    %v243 = vld [vmem:[#allocation5 + $0x498] sm:$0xff]
    %v244 = vld [vmem:[#allocation5 + $0x4a0] sm:$0xff]
    %v245 = vld [vmem:[#allocation5 + $0x4a8] sm:$0xff]
    %v246 = vld [vmem:[#allocation5 + $0x4b0] sm:$0xff]
    %v247 = vld [vmem:[#allocation5 + $0x4b8] sm:$0xff]
    %v248 = vld [vmem:[#allocation5 + $0x4c0] sm:$0xff]
    %v249 = vld [vmem:[#allocation5 + $0x4c8] sm:$0xff]
    %v250 = vld [vmem:[#allocation5 + $0x4d0] sm:$0xff]
    %v251 = vld [vmem:[#allocation5 + $0x4d8] sm:$0xff]
    %v252 = vld [vmem:[#allocation5 + $0x4e0] sm:$0xff]
    %v253 = vld [vmem:[#allocation5 + $0x4e8] sm:$0xff]
    %v254 = vld [vmem:[#allocation5 + $0x4f0] sm:$0xff]
    %v255 = vld [vmem:[#allocation5 + $0x4f8] sm:$0xff]
    %v256 = vld [vmem:[#allocation5 + $0x500] sm:$0xff]
    %v257 = vld [vmem:[#allocation5 + $0x508] sm:$0xff]
    %v258 = vld [vmem:[#allocation5 + $0x510] sm:$0xff]
    %v259 = vld [vmem:[#allocation5 + $0x518] sm:$0xff]
    %v260 = vld [vmem:[#allocation5 + $0x520] sm:$0xff]
    %v261 = vld [vmem:[#allocation5 + $0x528] sm:$0xff]
    %v262 = vld [vmem:[#allocation5 + $0x530] sm:$0xff]
    %v263 = vld [vmem:[#allocation5 + $0x538] sm:$0xff]
    %v264 = vld [vmem:[#allocation5 + $0x540] sm:$0xff]
    %v265 = vld [vmem:[#allocation5 + $0x548] sm:$0xff]
    %v266 = vld [vmem:[#allocation5 + $0x550] sm:$0xff]
    %v267 = vld [vmem:[#allocation5 + $0x558] sm:$0xff]
    %v268 = vld [vmem:[#allocation5 + $0x560] sm:$0xff]
    %v269 = vld [vmem:[#allocation5 + $0x568] sm:$0xff]
    %v270 = vld [vmem:[#allocation5 + $0x570] sm:$0xff]
    %v271 = vld [vmem:[#allocation5 + $0x578] sm:$0xff]
    %v272 = vld [vmem:[#allocation5 + $0x580] sm:$0xff]
    %v273 = vld [vmem:[#allocation5 + $0x588] sm:$0xff]
    %v274 = vld [vmem:[#allocation5 + $0x590] sm:$0xff]
    %v275 = vld [vmem:[#allocation5 + $0x598] sm:$0xff]
    %v276 = vld [vmem:[#allocation5 + $0x5a0] sm:$0xff]
    %v277 = vld [vmem:[#allocation5 + $0x5a8] sm:$0xff]
    %v278 = vld [vmem:[#allocation5 + $0x5b0] sm:$0xff]
    %v279 = vld [vmem:[#allocation5 + $0x5b8] sm:$0xff]
    %v280 = vld [vmem:[#allocation5 + $0x5c0] sm:$0xff]
    %v281 = vld [vmem:[#allocation5 + $0x5c8] sm:$0xff]
    %v282 = vld [vmem:[#allocation5 + $0x5d0] sm:$0xff]
    %v283 = vld [vmem:[#allocation5 + $0x5d8] sm:$0xff]
    %v284 = vld [vmem:[#allocation5 + $0x5e0] sm:$0xff]
    %v285 = vld [vmem:[#allocation5 + $0x5e8] sm:$0xff]
    %v286 = vld [vmem:[#allocation5 + $0x5f0] sm:$0xff]
    %v287 = vld [vmem:[#allocation5 + $0x5f8] sm:$0xff]
    %v288 = vld [vmem:[#allocation5 + $0x600] sm:$0xff]
    %v289 = vld [vmem:[#allocation5 + $0x608] sm:$0xff]
    %v290 = vld [vmem:[#allocation5 + $0x610] sm:$0xff]
    %v291 = vld [vmem:[#allocation5 + $0x618] sm:$0xff]
    %v292 = vld [vmem:[#allocation5 + $0x620] sm:$0xff]
    %v293 = vld [vmem:[#allocation5 + $0x628] sm:$0xff]
    %v294 = vld [vmem:[#allocation5 + $0x630] sm:$0xff]
    %v295 = vld [vmem:[#allocation5 + $0x638] sm:$0xff]
    %v296 = vld [vmem:[#allocation5 + $0x640] sm:$0xff]
    %v297 = vld [vmem:[#allocation5 + $0x648] sm:$0xff]
    %v298 = vld [vmem:[#allocation5 + $0x650] sm:$0xff]
    %v299 = vld [vmem:[#allocation5 + $0x658] sm:$0xff]
    %v300 = vld [vmem:[#allocation5 + $0x660] sm:$0xff]
    %v301 = vld [vmem:[#allocation5 + $0x668] sm:$0xff]
    %v302 = vld [vmem:[#allocation5 + $0x670] sm:$0xff]
    %v303 = vld [vmem:[#allocation5 + $0x678] sm:$0xff]
    %v304 = vld [vmem:[#allocation5 + $0x680] sm:$0xff]
    %v305 = vld [vmem:[#allocation5 + $0x688] sm:$0xff]
    %v306 = vld [vmem:[#allocation5 + $0x690] sm:$0xff]
    %v307 = vld [vmem:[#allocation5 + $0x698] sm:$0xff]
    %v308 = vld [vmem:[#allocation5 + $0x6a0] sm:$0xff]
    %v309 = vld [vmem:[#allocation5 + $0x6a8] sm:$0xff]
    %v310 = vld [vmem:[#allocation5 + $0x6b0] sm:$0xff]
    %v311 = vld [vmem:[#allocation5 + $0x6b8] sm:$0xff]
    %v312 = vld [vmem:[#allocation5 + $0x6c0] sm:$0xff]
    %v313 = vld [vmem:[#allocation5 + $0x6c8] sm:$0xff]
    %v314 = vld [vmem:[#allocation5 + $0x6d0] sm:$0xff]
    %v315 = vld [vmem:[#allocation5 + $0x6d8] sm:$0xff]
    %v316 = vld [vmem:[#allocation5 + $0x6e0] sm:$0xff]
    %v317 = vld [vmem:[#allocation5 + $0x6e8] sm:$0xff]
    %v318 = vld [vmem:[#allocation5 + $0x6f0] sm:$0xff]
    %v319 = vld [vmem:[#allocation5 + $0x6f8] sm:$0xff]
    %v320 = vld [vmem:[#allocation5 + $0x700] sm:$0xff]
    %v321 = vld [vmem:[#allocation5 + $0x708] sm:$0xff]
    %v322 = vld [vmem:[#allocation5 + $0x710] sm:$0xff]
    %v323 = vld [vmem:[#allocation5 + $0x718] sm:$0xff]
    %v324 = vld [vmem:[#allocation5 + $0x720] sm:$0xff]
    %v325 = vld [vmem:[#allocation5 + $0x728] sm:$0xff]
    %v326 = vld [vmem:[#allocation5 + $0x730] sm:$0xff]
    %v327 = vld [vmem:[#allocation5 + $0x738] sm:$0xff]
    %v328 = vld [vmem:[#allocation5 + $0x740] sm:$0xff]
    %v329 = vld [vmem:[#allocation5 + $0x748] sm:$0xff]
    %v330 = vld [vmem:[#allocation5 + $0x750] sm:$0xff]
    %v331 = vld [vmem:[#allocation5 + $0x758] sm:$0xff]
    %v332 = vld [vmem:[#allocation5 + $0x760] sm:$0xff]
    %v333 = vld [vmem:[#allocation5 + $0x768] sm:$0xff]
    %v334 = vld [vmem:[#allocation5 + $0x770] sm:$0xff]
    %v335 = vld [vmem:[#allocation5 + $0x778] sm:$0xff]
    %v336 = vld [vmem:[#allocation5 + $0x780] sm:$0xff]
    %v337 = vld [vmem:[#allocation5 + $0x788] sm:$0xff]
    %v338 = vld [vmem:[#allocation5 + $0x790] sm:$0xff]
    %v339 = vld [vmem:[#allocation5 + $0x798] sm:$0xff]
    %v340 = vld [vmem:[#allocation5 + $0x7a0] sm:$0xff]
    %v341 = vld [vmem:[#allocation5 + $0x7a8] sm:$0xff]
    %v342 = vld [vmem:[#allocation5 + $0x7b0] sm:$0xff]
    %v343 = vld [vmem:[#allocation5 + $0x7b8] sm:$0xff]
    %v344 = vld [vmem:[#allocation5 + $0x7c0] sm:$0xff]
    %v345 = vld [vmem:[#allocation5 + $0x7c8] sm:$0xff]
    %v346 = vld [vmem:[#allocation5 + $0x7d0] sm:$0xff]
    %v347 = vld [vmem:[#allocation5 + $0x7d8] sm:$0xff]
    %v348 = vld [vmem:[#allocation5 + $0x7e0] sm:$0xff]
    %v349 = vld [vmem:[#allocation5 + $0x7e8] sm:$0xff]
    %v350 = vld [vmem:[#allocation5 + $0x7f0] sm:$0xff]
    %v351 = vld [vmem:[#allocation5 + $0x7f8] sm:$0xff]
    %v352 = vld [vmem:[#allocation5 + $0x800] sm:$0xff]
    %v353 = vld [vmem:[#allocation5 + $0x808] sm:$0xff]
    %v354 = vld [vmem:[#allocation5 + $0x810] sm:$0xff]
    %v355 = vld [vmem:[#allocation5 + $0x818] sm:$0xff]
    %v356 = vld [vmem:[#allocation5 + $0x820] sm:$0xff]
    %v357 = vld [vmem:[#allocation5 + $0x828] sm:$0xff]
    %v358 = vld [vmem:[#allocation5 + $0x830] sm:$0xff]
    %v359 = vld [vmem:[#allocation5 + $0x838] sm:$0xff]
    %v360 = vld [vmem:[#allocation5 + $0x840] sm:$0xff]
    %v361 = vld [vmem:[#allocation5 + $0x848] sm:$0xff]
    %v362 = vld [vmem:[#allocation5 + $0x850] sm:$0xff]
    %v363 = vld [vmem:[#allocation5 + $0x858] sm:$0xff]
    %v364 = vld [vmem:[#allocation5 + $0x860] sm:$0xff]
    %v365 = vld [vmem:[#allocation5 + $0x868] sm:$0xff]
    %v366 = vld [vmem:[#allocation5 + $0x870] sm:$0xff]
    %v367 = vld [vmem:[#allocation5 + $0x878] sm:$0xff]
    %v368 = vld [vmem:[#allocation5 + $0x880] sm:$0xff]
    %v369 = vld [vmem:[#allocation5 + $0x888] sm:$0xff]
    %v370 = vld [vmem:[#allocation5 + $0x890] sm:$0xff]
    %v371 = vld [vmem:[#allocation5 + $0x898] sm:$0xff]
    %v372 = vld [vmem:[#allocation5 + $0x8a0] sm:$0xff]
    %v373 = vld [vmem:[#allocation5 + $0x8a8] sm:$0xff]
    %v374 = vld [vmem:[#allocation5 + $0x8b0] sm:$0xff]
    %v375 = vld [vmem:[#allocation5 + $0x8b8] sm:$0xff]
    %v376 = vld [vmem:[#allocation5 + $0x8c0] sm:$0xff]
    %v377 = vld [vmem:[#allocation5 + $0x8c8] sm:$0xff]
    %v378 = vld [vmem:[#allocation5 + $0x8d0] sm:$0xff]
    %v379 = vld [vmem:[#allocation5 + $0x8d8] sm:$0xff]
    %v380 = vld [vmem:[#allocation5 + $0x8e0] sm:$0xff]
    %v381 = vld [vmem:[#allocation5 + $0x8e8] sm:$0xff]
    %v382 = vld [vmem:[#allocation5 + $0x8f0] sm:$0xff]
    %v383 = vld [vmem:[#allocation5 + $0x8f8] sm:$0xff]
    %v384 = vld [vmem:[#allocation5 + $0x900] sm:$0xff]
    %v385 = vld [vmem:[#allocation5 + $0x908] sm:$0xff]
    %v386 = vld [vmem:[#allocation5 + $0x910] sm:$0xff]
    %v387 = vld [vmem:[#allocation5 + $0x918] sm:$0xff]
    %v388 = vld [vmem:[#allocation5 + $0x920] sm:$0xff]
    %v389 = vld [vmem:[#allocation5 + $0x928] sm:$0xff]
    %v390 = vld [vmem:[#allocation5 + $0x930] sm:$0xff]
    %v391 = vld [vmem:[#allocation5 + $0x938] sm:$0xff]
    %v392 = vld [vmem:[#allocation5 + $0x940] sm:$0xff]
    %v393 = vld [vmem:[#allocation5 + $0x948] sm:$0xff]
    %v394 = vld [vmem:[#allocation5 + $0x950] sm:$0xff]
    %v395 = vld [vmem:[#allocation5 + $0x958] sm:$0xff]
    %v396 = vld [vmem:[#allocation5 + $0x960] sm:$0xff]
    %v397 = vld [vmem:[#allocation5 + $0x968] sm:$0xff]
    %v398 = vld [vmem:[#allocation5 + $0x970] sm:$0xff]
    %v399 = vld [vmem:[#allocation5 + $0x978] sm:$0xff]
    %v400 = vld [vmem:[#allocation5 + $0x980] sm:$0xff]
    %v401 = vld [vmem:[#allocation5 + $0x988] sm:$0xff]
    %v402 = vld [vmem:[#allocation5 + $0x990] sm:$0xff]
    %v403 = vld [vmem:[#allocation5 + $0x998] sm:$0xff]
    %v404 = vld [vmem:[#allocation5 + $0x9a0] sm:$0xff]
    %v405 = vld [vmem:[#allocation5 + $0x9a8] sm:$0xff]
    %v406 = vld [vmem:[#allocation5 + $0x9b0] sm:$0xff]
    %v407 = vld [vmem:[#allocation5 + $0x9b8] sm:$0xff]
    %v408 = vld [vmem:[#allocation5 + $0x9c0] sm:$0xff]
    %v409 = vld [vmem:[#allocation5 + $0x9c8] sm:$0xff]
    %v410 = vld [vmem:[#allocation5 + $0x9d0] sm:$0xff]
    %v411 = vld [vmem:[#allocation5 + $0x9d8] sm:$0xff]
    %v412 = vld [vmem:[#allocation5 + $0x9e0] sm:$0xff]
    %v413 = vld [vmem:[#allocation5 + $0x9e8] sm:$0xff]
    %v414 = vld [vmem:[#allocation5 + $0x9f0] sm:$0xff]
    %v415 = vld [vmem:[#allocation5 + $0x9f8] sm:$0xff]
    %v416 = vld [vmem:[#allocation5 + $0xa00] sm:$0xff]
    %v417 = vld [vmem:[#allocation5 + $0xa08] sm:$0xff]
    %v418 = vld [vmem:[#allocation5 + $0xa10] sm:$0xff]
    %v419 = vld [vmem:[#allocation5 + $0xa18] sm:$0xff]
    %v420 = vld [vmem:[#allocation5 + $0xa20] sm:$0xff]
    %v421 = vld [vmem:[#allocation5 + $0xa28] sm:$0xff]
    %v422 = vld [vmem:[#allocation5 + $0xa30] sm:$0xff]
    %v423 = vld [vmem:[#allocation5 + $0xa38] sm:$0xff]
    %v424 = vld [vmem:[#allocation5 + $0xa40] sm:$0xff]
    %v425 = vld [vmem:[#allocation5 + $0xa48] sm:$0xff]
    %v426 = vld [vmem:[#allocation5 + $0xa50] sm:$0xff]
    %v427 = vld [vmem:[#allocation5 + $0xa58] sm:$0xff]
    %v428 = vld [vmem:[#allocation5 + $0xa60] sm:$0xff]
    %v429 = vld [vmem:[#allocation5 + $0xa68] sm:$0xff]
    %v430 = vld [vmem:[#allocation5 + $0xa70] sm:$0xff]
    %v431 = vld [vmem:[#allocation5 + $0xa78] sm:$0xff]
    %v432 = vld [vmem:[#allocation5 + $0xa80] sm:$0xff]
    %v433 = vld [vmem:[#allocation5 + $0xa88] sm:$0xff]
    %v434 = vld [vmem:[#allocation5 + $0xa90] sm:$0xff]
    %v435 = vld [vmem:[#allocation5 + $0xa98] sm:$0xff]
    %v436 = vld [vmem:[#allocation5 + $0xaa0] sm:$0xff]
    %v437 = vld [vmem:[#allocation5 + $0xaa8] sm:$0xff]
    %v438 = vld [vmem:[#allocation5 + $0xab0] sm:$0xff]
    %v439 = vld [vmem:[#allocation5 + $0xab8] sm:$0xff]
    %v440 = vld [vmem:[#allocation5 + $0xac0] sm:$0xff]
    %v441 = vld [vmem:[#allocation5 + $0xac8] sm:$0xff]
    %v442 = vld [vmem:[#allocation5 + $0xad0] sm:$0xff]
    %v443 = vld [vmem:[#allocation5 + $0xad8] sm:$0xff]
    %v444 = vld [vmem:[#allocation5 + $0xae0] sm:$0xff]
    %v445 = vld [vmem:[#allocation5 + $0xae8] sm:$0xff]
    %v446 = vld [vmem:[#allocation5 + $0xaf0] sm:$0xff]
    %v447 = vld [vmem:[#allocation5 + $0xaf8] sm:$0xff]
    %v448 = vld [vmem:[#allocation5 + $0xb00] sm:$0xff]
    %v449 = vld [vmem:[#allocation5 + $0xb08] sm:$0xff]
    %v450 = vld [vmem:[#allocation5 + $0xb10] sm:$0xff]
    %v451 = vld [vmem:[#allocation5 + $0xb18] sm:$0xff]
    %v452 = vld [vmem:[#allocation5 + $0xb20] sm:$0xff]
    %v453 = vld [vmem:[#allocation5 + $0xb28] sm:$0xff]
    %v454 = vld [vmem:[#allocation5 + $0xb30] sm:$0xff]
    %v455 = vld [vmem:[#allocation5 + $0xb38] sm:$0xff]
    %v456 = vld [vmem:[#allocation5 + $0xb40] sm:$0x77]
    %v457 = vld [vmem:[#allocation5 + $0xb48] sm:$0x77]
    %v458 = vld [vmem:[#allocation5 + $0xb50] sm:$0x77]
    %v459 = vld [vmem:[#allocation5 + $0xb58] sm:$0x77]
    %v460 = vld [vmem:[#allocation7] sm:$0xff]
    %v462 = vlaneseq
    %v463 = vshrl.u32 %v462, 7
    %v464 = vsub.s32 0, %v463
    %v465 = vrot.slane %v460, %v464
    %v466 = vlaneseq
    %v467 = vshrl.u32 %v466, 7
    %v468 = vsub.s32 1, %v467
    %v469 = vrot.slane %v460, %v468
    %v470 = vlaneseq
    %v471 = vshrl.u32 %v470, 7
    %v472 = vsub.s32 2, %v471
    %v473 = vrot.slane %v460, %v472
    %v474 = vlaneseq
    %v475 = vshrl.u32 %v474, 7
    %v476 = vsub.s32 3, %v475
    %v477 = vrot.slane %v460, %v476
    %v478 = vlaneseq
    %v479 = vshrl.u32 %v478, 7
    %v480 = vsub.s32 4, %v479
    %v481 = vrot.slane %v460, %v480
    %v482 = vlaneseq
    %v483 = vshrl.u32 %v482, 7
    %v484 = vsub.s32 5, %v483
    %v485 = vrot.slane %v460, %v484
    %v486 = vlaneseq
    %v487 = vshrl.u32 %v486, 7
    %v488 = vsub.s32 6, %v487
    %v489 = vrot.slane %v460, %v488
    %v490 = vlaneseq
    %v491 = vshrl.u32 %v490, 7
    %v492 = vsub.s32 7, %v491
    %v493 = vrot.slane %v460, %v492
    %v866 = vunpack.c.l.b16 %v96
    %v867 = vunpack.c.h.b16 %v96
    %v868 = vunpack.c.l.b16 %v97
    %v869 = vunpack.c.h.b16 %v97
    %v870 = vunpack.c.l.b16 %v98
    %v871 = vunpack.c.h.b16 %v98
    %v872 = vunpack.c.l.b16 %v99
    %v873 = vunpack.c.h.b16 %v99
    %v874 = vunpack.c.l.b16 %v100
    %v875 = vunpack.c.h.b16 %v100
    %v876 = vunpack.c.l.b16 %v101
    %v877 = vunpack.c.h.b16 %v101
    %v878 = vunpack.c.l.b16 %v102
    %v879 = vunpack.c.h.b16 %v102
    %v880 = vunpack.c.l.b16 %v103
    %v881 = vunpack.c.h.b16 %v103
    %v882 = vunpack.c.l.b16 %v104
    %v883 = vunpack.c.h.b16 %v104
    %v884 = vunpack.c.l.b16 %v105
    %v885 = vunpack.c.h.b16 %v105
    %v886 = vunpack.c.l.b16 %v106
    %v887 = vunpack.c.h.b16 %v106
    %v888 = vunpack.c.l.b16 %v107
    %v889 = vunpack.c.h.b16 %v107
    %v890 = vunpack.c.l.b16 %v108
    %v891 = vunpack.c.h.b16 %v108
    %v892 = vunpack.c.l.b16 %v109
    %v893 = vunpack.c.h.b16 %v109
    %v894 = vunpack.c.l.b16 %v110
    %v895 = vunpack.c.h.b16 %v110
    %v896 = vunpack.c.l.b16 %v111
    %v897 = vunpack.c.h.b16 %v111
    %v898 = vunpack.c.l.b16 %v112
    %v899 = vunpack.c.h.b16 %v112
    %v900 = vunpack.c.l.b16 %v113
    %v901 = vunpack.c.h.b16 %v113
    %v902 = vunpack.c.l.b16 %v114
    %v903 = vunpack.c.h.b16 %v114
    %v904 = vunpack.c.l.b16 %v115
    %v905 = vunpack.c.h.b16 %v115
    %v906 = vunpack.c.l.b16 %v116
    %v907 = vunpack.c.h.b16 %v116
    %v908 = vunpack.c.l.b16 %v117
    %v909 = vunpack.c.h.b16 %v117
    %v910 = vunpack.c.l.b16 %v118
    %v911 = vunpack.c.h.b16 %v118
    %v912 = vunpack.c.l.b16 %v119
    %v913 = vunpack.c.h.b16 %v119
    %v914 = vunpack.c.l.b16 %v120
    %v915 = vunpack.c.h.b16 %v120
    %v916 = vunpack.c.l.b16 %v121
    %v917 = vunpack.c.h.b16 %v121
    %v918 = vunpack.c.l.b16 %v122
    %v919 = vunpack.c.h.b16 %v122
    %v920 = vunpack.c.l.b16 %v123
    %v921 = vunpack.c.h.b16 %v123
    %v922 = vunpack.c.l.b16 %v124
    %v923 = vunpack.c.h.b16 %v124
    %v924 = vunpack.c.l.b16 %v125
    %v925 = vunpack.c.h.b16 %v125
    %v926 = vunpack.c.l.b16 %v126
    %v927 = vunpack.c.h.b16 %v126
    %v928 = vunpack.c.l.b16 %v127
    %v929 = vunpack.c.h.b16 %v127
    %v930 = vunpack.c.l.b16 %v128
    %v931 = vunpack.c.h.b16 %v128
    %v932 = vunpack.c.l.b16 %v129
    %v933 = vunpack.c.h.b16 %v129
    %v934 = vunpack.c.l.b16 %v130
    %v935 = vunpack.c.h.b16 %v130
    %v936 = vunpack.c.l.b16 %v131
    %v937 = vunpack.c.h.b16 %v131
    %v938 = vunpack.c.l.b16 %v132
    %v939 = vunpack.c.h.b16 %v132
    %v940 = vunpack.c.l.b16 %v133
    %v941 = vunpack.c.h.b16 %v133
    %v942 = vunpack.c.l.b16 %v134
    %v943 = vunpack.c.h.b16 %v134
    %v944 = vunpack.c.l.b16 %v135
    %v945 = vunpack.c.h.b16 %v135
    %v946 = vunpack.c.l.b16 %v136
    %v947 = vunpack.c.h.b16 %v136
    %v948 = vunpack.c.l.b16 %v137
    %v949 = vunpack.c.h.b16 %v137
    %v950 = vunpack.c.l.b16 %v138
    %v951 = vunpack.c.h.b16 %v138
    %v952 = vunpack.c.l.b16 %v139
    %v953 = vunpack.c.h.b16 %v139
    %v954 = vunpack.c.l.b16 %v140
    %v955 = vunpack.c.h.b16 %v140
    %v956 = vunpack.c.l.b16 %v141
    %v957 = vunpack.c.h.b16 %v141
    %v958 = vunpack.c.l.b16 %v142
    %v959 = vunpack.c.h.b16 %v142
    %v960 = vunpack.c.l.b16 %v143
    %v961 = vunpack.c.h.b16 %v143
    %v962 = vunpack.c.l.b16 %v144
    %v963 = vunpack.c.h.b16 %v144
    %v964 = vunpack.c.l.b16 %v145
    %v965 = vunpack.c.h.b16 %v145
    %v966 = vunpack.c.l.b16 %v146
    %v967 = vunpack.c.h.b16 %v146
    %v968 = vunpack.c.l.b16 %v147
    %v969 = vunpack.c.h.b16 %v147
    %v970 = vunpack.c.l.b16 %v148
    %v971 = vunpack.c.h.b16 %v148
    %v972 = vunpack.c.l.b16 %v149
    %v973 = vunpack.c.h.b16 %v149
    %v974 = vunpack.c.l.b16 %v150
    %v975 = vunpack.c.h.b16 %v150
    %v976 = vunpack.c.l.b16 %v151
    %v977 = vunpack.c.h.b16 %v151
    %v978 = vunpack.c.l.b16 %v152
    %v979 = vunpack.c.h.b16 %v152
    %v980 = vunpack.c.l.b16 %v153
    %v981 = vunpack.c.h.b16 %v153
    %v982 = vunpack.c.l.b16 %v154
    %v983 = vunpack.c.h.b16 %v154
    %v984 = vunpack.c.l.b16 %v155
    %v985 = vunpack.c.h.b16 %v155
    %v986 = vunpack.c.l.b16 %v156
    %v987 = vunpack.c.h.b16 %v156
    %v988 = vunpack.c.l.b16 %v157
    %v989 = vunpack.c.h.b16 %v157
    %v990 = vunpack.c.l.b16 %v158
    %v991 = vunpack.c.h.b16 %v158
    %v992 = vunpack.c.l.b16 %v159
    %v993 = vunpack.c.h.b16 %v159
    %v994 = vunpack.c.l.b16 %v160
    %v995 = vunpack.c.h.b16 %v160
    %v996 = vunpack.c.l.b16 %v161
    %v997 = vunpack.c.h.b16 %v161
    %v998 = vunpack.c.l.b16 %v162
    %v999 = vunpack.c.h.b16 %v162
    %v1000 = vunpack.c.l.b16 %v163
    %v1001 = vunpack.c.h.b16 %v163
    %v1002 = vunpack.c.l.b16 %v164
    %v1003 = vunpack.c.h.b16 %v164
    %v1004 = vunpack.c.l.b16 %v165
    %v1005 = vunpack.c.h.b16 %v165
    %v1006 = vunpack.c.l.b16 %v166
    %v1007 = vunpack.c.h.b16 %v166
    %v1008 = vunpack.c.l.b16 %v167
    %v1009 = vunpack.c.h.b16 %v167
    %v1010 = vunpack.c.l.b16 %v168
    %v1011 = vunpack.c.h.b16 %v168
    %v1012 = vunpack.c.l.b16 %v169
    %v1013 = vunpack.c.h.b16 %v169
    %v1014 = vunpack.c.l.b16 %v170
    %v1015 = vunpack.c.h.b16 %v170
    %v1016 = vunpack.c.l.b16 %v171
    %v1017 = vunpack.c.h.b16 %v171
    %v1018 = vunpack.c.l.b16 %v172
    %v1019 = vunpack.c.h.b16 %v172
    %v1020 = vunpack.c.l.b16 %v173
    %v1021 = vunpack.c.h.b16 %v173
    %v1022 = vunpack.c.l.b16 %v174
    %v1023 = vunpack.c.h.b16 %v174
    %v1024 = vunpack.c.l.b16 %v175
    %v1025 = vunpack.c.h.b16 %v175
    %v1026 = vunpack.c.l.b16 %v176
    %v1027 = vunpack.c.h.b16 %v176
    %v1028 = vunpack.c.l.b16 %v177
    %v1029 = vunpack.c.h.b16 %v177
    %v1030 = vunpack.c.l.b16 %v178
    %v1031 = vunpack.c.h.b16 %v178
    %v1032 = vunpack.c.l.b16 %v179
    %v1033 = vunpack.c.h.b16 %v179
    %v1034 = vunpack.c.l.b16 %v180
    %v1035 = vunpack.c.h.b16 %v180
    %v1036 = vunpack.c.l.b16 %v181
    %v1037 = vunpack.c.h.b16 %v181
    %v1038 = vunpack.c.l.b16 %v182
    %v1039 = vunpack.c.h.b16 %v182
    %v1040 = vunpack.c.l.b16 %v183
    %v1041 = vunpack.c.h.b16 %v183
    %v1042 = vunpack.c.l.b16 %v184
    %v1043 = vunpack.c.h.b16 %v184
    %v1044 = vunpack.c.l.b16 %v185
    %v1045 = vunpack.c.h.b16 %v185
    %v1046 = vunpack.c.l.b16 %v186
    %v1047 = vunpack.c.h.b16 %v186
    %v1048 = vunpack.c.l.b16 %v187
    %v1049 = vunpack.c.h.b16 %v187
    %v1050 = vunpack.c.l.b16 %v188
    %v1051 = vunpack.c.h.b16 %v188
    %v1052 = vunpack.c.l.b16 %v189
    %v1053 = vunpack.c.h.b16 %v189
    %v1054 = vunpack.c.l.b16 %v190
    %v1055 = vunpack.c.h.b16 %v190
    %v1056 = vunpack.c.l.b16 %v191
    %v1057 = vunpack.c.h.b16 %v191
    %v1058 = vunpack.c.l.b16 %v192
    %v1059 = vunpack.c.h.b16 %v192
    %v1060 = vunpack.c.l.b16 %v193
    %v1061 = vunpack.c.h.b16 %v193
    %v1062 = vunpack.c.l.b16 %v194
    %v1063 = vunpack.c.h.b16 %v194
    %v1064 = vunpack.c.l.b16 %v195
    %v1065 = vunpack.c.h.b16 %v195
    %v1066 = vunpack.c.l.b16 %v196
    %v1067 = vunpack.c.h.b16 %v196
    %v1068 = vunpack.c.l.b16 %v197
    %v1069 = vunpack.c.h.b16 %v197
    %v1070 = vunpack.c.l.b16 %v198
    %v1071 = vunpack.c.h.b16 %v198
    %v1072 = vunpack.c.l.b16 %v199
    %v1073 = vunpack.c.h.b16 %v199
    %v1074 = vunpack.c.l.b16 %v200
    %v1075 = vunpack.c.h.b16 %v200
    %v1076 = vunpack.c.l.b16 %v201
    %v1077 = vunpack.c.h.b16 %v201
    %v1078 = vunpack.c.l.b16 %v202
    %v1079 = vunpack.c.h.b16 %v202
    %v1080 = vunpack.c.l.b16 %v203
    %v1081 = vunpack.c.h.b16 %v203
    %v1082 = vunpack.c.l.b16 %v204
    %v1083 = vunpack.c.h.b16 %v204
    %v1084 = vunpack.c.l.b16 %v205
    %v1085 = vunpack.c.h.b16 %v205
    %v1086 = vunpack.c.l.b16 %v206
    %v1087 = vunpack.c.h.b16 %v206
    %v1088 = vunpack.c.l.b16 %v207
    %v1089 = vunpack.c.h.b16 %v207
    %v1090 = vunpack.c.l.b16 %v208
    %v1091 = vunpack.c.h.b16 %v208
    %v1092 = vunpack.c.l.b16 %v209
    %v1093 = vunpack.c.h.b16 %v209
    %v1094 = vunpack.c.l.b16 %v210
    %v1095 = vunpack.c.h.b16 %v210
    %v1096 = vunpack.c.l.b16 %v211
    %v1097 = vunpack.c.h.b16 %v211
    %v1098 = vunpack.c.l.b16 %v212
    %v1099 = vunpack.c.h.b16 %v212
    %v1100 = vunpack.c.l.b16 %v213
    %v1101 = vunpack.c.h.b16 %v213
    %v1102 = vunpack.c.l.b16 %v214
    %v1103 = vunpack.c.h.b16 %v214
    %v1104 = vunpack.c.l.b16 %v215
    %v1105 = vunpack.c.h.b16 %v215
    %v1106 = vunpack.c.l.b16 %v216
    %v1107 = vunpack.c.h.b16 %v216
    %v1108 = vunpack.c.l.b16 %v217
    %v1109 = vunpack.c.h.b16 %v217
    %v1110 = vunpack.c.l.b16 %v218
    %v1111 = vunpack.c.h.b16 %v218
    %v1112 = vunpack.c.l.b16 %v219
    %v1113 = vunpack.c.h.b16 %v219
    %v1114 = vunpack.c.l.b16 %v220
    %v1115 = vunpack.c.h.b16 %v220
    %v1116 = vunpack.c.l.b16 %v221
    %v1117 = vunpack.c.h.b16 %v221
    %v1118 = vunpack.c.l.b16 %v222
    %v1119 = vunpack.c.h.b16 %v222
    %v1120 = vunpack.c.l.b16 %v223
    %v1121 = vunpack.c.h.b16 %v223
    %v1122 = vunpack.c.l.b16 %v224
    %v1123 = vunpack.c.h.b16 %v224
    %v1124 = vunpack.c.l.b16 %v225
    %v1125 = vunpack.c.h.b16 %v225
    %v1126 = vunpack.c.l.b16 %v226
    %v1127 = vunpack.c.h.b16 %v226
    %v1128 = vunpack.c.l.b16 %v227
    %v1129 = vunpack.c.h.b16 %v227
    %v1130 = vunpack.c.l.b16 %v228
    %v1131 = vunpack.c.h.b16 %v228
    %v1132 = vunpack.c.l.b16 %v229
    %v1133 = vunpack.c.h.b16 %v229
    %v1134 = vunpack.c.l.b16 %v230
    %v1135 = vunpack.c.h.b16 %v230
    %v1136 = vunpack.c.l.b16 %v231
    %v1137 = vunpack.c.h.b16 %v231
    %v1138 = vunpack.c.l.b16 %v232
    %v1139 = vunpack.c.h.b16 %v232
    %v1140 = vunpack.c.l.b16 %v233
    %v1141 = vunpack.c.h.b16 %v233
    %v1142 = vunpack.c.l.b16 %v234
    %v1143 = vunpack.c.h.b16 %v234
    %v1144 = vunpack.c.l.b16 %v235
    %v1145 = vunpack.c.h.b16 %v235
    %v1146 = vunpack.c.l.b16 %v236
    %v1147 = vunpack.c.h.b16 %v236
    %v1148 = vunpack.c.l.b16 %v237
    %v1149 = vunpack.c.h.b16 %v237
    %v1150 = vunpack.c.l.b16 %v238
    %v1151 = vunpack.c.h.b16 %v238
    %v1152 = vunpack.c.l.b16 %v239
    %v1153 = vunpack.c.h.b16 %v239
    %v1154 = vunpack.c.l.b16 %v240
    %v1155 = vunpack.c.h.b16 %v240
    %v1156 = vunpack.c.l.b16 %v241
    %v1157 = vunpack.c.h.b16 %v241
    %v1158 = vunpack.c.l.b16 %v242
    %v1159 = vunpack.c.h.b16 %v242
    %v1160 = vunpack.c.l.b16 %v243
    %v1161 = vunpack.c.h.b16 %v243
    %v1162 = vunpack.c.l.b16 %v244
    %v1163 = vunpack.c.h.b16 %v244
    %v1164 = vunpack.c.l.b16 %v245
    %v1165 = vunpack.c.h.b16 %v245
    %v1166 = vunpack.c.l.b16 %v246
    %v1167 = vunpack.c.h.b16 %v246
    %v1168 = vunpack.c.l.b16 %v247
    %v1169 = vunpack.c.h.b16 %v247
    %v1170 = vunpack.c.l.b16 %v248
    %v1171 = vunpack.c.h.b16 %v248
    %v1172 = vunpack.c.l.b16 %v249
    %v1173 = vunpack.c.h.b16 %v249
    %v1174 = vunpack.c.l.b16 %v250
    %v1175 = vunpack.c.h.b16 %v250
    %v1176 = vunpack.c.l.b16 %v251
    %v1177 = vunpack.c.h.b16 %v251
    %v1178 = vunpack.c.l.b16 %v252
    %v1179 = vunpack.c.h.b16 %v252
    %v1180 = vunpack.c.l.b16 %v253
    %v1181 = vunpack.c.h.b16 %v253
    %v1182 = vunpack.c.l.b16 %v254
    %v1183 = vunpack.c.h.b16 %v254
    %v1184 = vunpack.c.l.b16 %v255
    %v1185 = vunpack.c.h.b16 %v255
    %v1186 = vunpack.c.l.b16 %v256
    %v1187 = vunpack.c.h.b16 %v256
    %v1188 = vunpack.c.l.b16 %v257
    %v1189 = vunpack.c.h.b16 %v257
    %v1190 = vunpack.c.l.b16 %v258
    %v1191 = vunpack.c.h.b16 %v258
    %v1192 = vunpack.c.l.b16 %v259
    %v1193 = vunpack.c.h.b16 %v259
    %v1194 = vunpack.c.l.b16 %v260
    %v1195 = vunpack.c.h.b16 %v260
    %v1196 = vunpack.c.l.b16 %v261
    %v1197 = vunpack.c.h.b16 %v261
    %v1198 = vunpack.c.l.b16 %v262
    %v1199 = vunpack.c.h.b16 %v262
    %v1200 = vunpack.c.l.b16 %v263
    %v1201 = vunpack.c.h.b16 %v263
    %v1202 = vunpack.c.l.b16 %v264
    %v1203 = vunpack.c.h.b16 %v264
    %v1204 = vunpack.c.l.b16 %v265
    %v1205 = vunpack.c.h.b16 %v265
    %v1206 = vunpack.c.l.b16 %v266
    %v1207 = vunpack.c.h.b16 %v266
    %v1208 = vunpack.c.l.b16 %v267
    %v1209 = vunpack.c.h.b16 %v267
    %v1210 = vunpack.c.l.b16 %v268
    %v1211 = vunpack.c.h.b16 %v268
    %v1212 = vunpack.c.l.b16 %v269
    %v1213 = vunpack.c.h.b16 %v269
    %v1214 = vunpack.c.l.b16 %v270
    %v1215 = vunpack.c.h.b16 %v270
    %v1216 = vunpack.c.l.b16 %v271
    %v1217 = vunpack.c.h.b16 %v271
    %v1218 = vunpack.c.l.b16 %v272
    %v1219 = vunpack.c.h.b16 %v272
    %v1220 = vunpack.c.l.b16 %v273
    %v1221 = vunpack.c.h.b16 %v273
    %v1222 = vunpack.c.l.b16 %v274
    %v1223 = vunpack.c.h.b16 %v274
    %v1224 = vunpack.c.l.b16 %v275
    %v1225 = vunpack.c.h.b16 %v275
    %v1226 = vunpack.c.l.b16 %v276
    %v1227 = vunpack.c.h.b16 %v276
    %v1228 = vunpack.c.l.b16 %v277
    %v1229 = vunpack.c.h.b16 %v277
    %v1230 = vunpack.c.l.b16 %v278
    %v1231 = vunpack.c.h.b16 %v278
    %v1232 = vunpack.c.l.b16 %v279
    %v1233 = vunpack.c.h.b16 %v279
    %v1234 = vunpack.c.l.b16 %v280
    %v1235 = vunpack.c.h.b16 %v280
    %v1236 = vunpack.c.l.b16 %v281
    %v1237 = vunpack.c.h.b16 %v281
    %v1238 = vunpack.c.l.b16 %v282
    %v1239 = vunpack.c.h.b16 %v282
    %v1240 = vunpack.c.l.b16 %v283
    %v1241 = vunpack.c.h.b16 %v283
    %v1242 = vunpack.c.l.b16 %v284
    %v1243 = vunpack.c.h.b16 %v284
    %v1244 = vunpack.c.l.b16 %v285
    %v1245 = vunpack.c.h.b16 %v285
    %v1246 = vunpack.c.l.b16 %v286
    %v1247 = vunpack.c.h.b16 %v286
    %v1248 = vunpack.c.l.b16 %v287
    %v1249 = vunpack.c.h.b16 %v287
    %v1250 = vunpack.c.l.b16 %v288
    %v1251 = vunpack.c.h.b16 %v288
    %v1252 = vunpack.c.l.b16 %v289
    %v1253 = vunpack.c.h.b16 %v289
    %v1254 = vunpack.c.l.b16 %v290
    %v1255 = vunpack.c.h.b16 %v290
    %v1256 = vunpack.c.l.b16 %v291
    %v1257 = vunpack.c.h.b16 %v291
    %v1258 = vunpack.c.l.b16 %v292
    %v1259 = vunpack.c.h.b16 %v292
    %v1260 = vunpack.c.l.b16 %v293
    %v1261 = vunpack.c.h.b16 %v293
    %v1262 = vunpack.c.l.b16 %v294
    %v1263 = vunpack.c.h.b16 %v294
    %v1264 = vunpack.c.l.b16 %v295
    %v1265 = vunpack.c.h.b16 %v295
    %v1266 = vunpack.c.l.b16 %v296
    %v1267 = vunpack.c.h.b16 %v296
    %v1268 = vunpack.c.l.b16 %v297
    %v1269 = vunpack.c.h.b16 %v297
    %v1270 = vunpack.c.l.b16 %v298
    %v1271 = vunpack.c.h.b16 %v298
    %v1272 = vunpack.c.l.b16 %v299
    %v1273 = vunpack.c.h.b16 %v299
    %v1274 = vunpack.c.l.b16 %v300
    %v1275 = vunpack.c.h.b16 %v300
    %v1276 = vunpack.c.l.b16 %v301
    %v1277 = vunpack.c.h.b16 %v301
    %v1278 = vunpack.c.l.b16 %v302
    %v1279 = vunpack.c.h.b16 %v302
    %v1280 = vunpack.c.l.b16 %v303
    %v1281 = vunpack.c.h.b16 %v303
    %v1282 = vunpack.c.l.b16 %v304
    %v1283 = vunpack.c.h.b16 %v304
    %v1284 = vunpack.c.l.b16 %v305
    %v1285 = vunpack.c.h.b16 %v305
    %v1286 = vunpack.c.l.b16 %v306
    %v1287 = vunpack.c.h.b16 %v306
    %v1288 = vunpack.c.l.b16 %v307
    %v1289 = vunpack.c.h.b16 %v307
    %v1290 = vunpack.c.l.b16 %v308
    %v1291 = vunpack.c.h.b16 %v308
    %v1292 = vunpack.c.l.b16 %v309
    %v1293 = vunpack.c.h.b16 %v309
    %v1294 = vunpack.c.l.b16 %v310
    %v1295 = vunpack.c.h.b16 %v310
    %v1296 = vunpack.c.l.b16 %v311
    %v1297 = vunpack.c.h.b16 %v311
    %v1298 = vunpack.c.l.b16 %v312
    %v1299 = vunpack.c.h.b16 %v312
    %v1300 = vunpack.c.l.b16 %v313
    %v1301 = vunpack.c.h.b16 %v313
    %v1302 = vunpack.c.l.b16 %v314
    %v1303 = vunpack.c.h.b16 %v314
    %v1304 = vunpack.c.l.b16 %v315
    %v1305 = vunpack.c.h.b16 %v315
    %v1306 = vunpack.c.l.b16 %v316
    %v1307 = vunpack.c.h.b16 %v316
    %v1308 = vunpack.c.l.b16 %v317
    %v1309 = vunpack.c.h.b16 %v317
    %v1310 = vunpack.c.l.b16 %v318
    %v1311 = vunpack.c.h.b16 %v318
    %v1312 = vunpack.c.l.b16 %v319
    %v1313 = vunpack.c.h.b16 %v319
    %v1314 = vunpack.c.l.b16 %v320
    %v1315 = vunpack.c.h.b16 %v320
    %v1316 = vunpack.c.l.b16 %v321
    %v1317 = vunpack.c.h.b16 %v321
    %v1318 = vunpack.c.l.b16 %v322
    %v1319 = vunpack.c.h.b16 %v322
    %v1320 = vunpack.c.l.b16 %v323
    %v1321 = vunpack.c.h.b16 %v323
    %v1322 = vunpack.c.l.b16 %v324
    %v1323 = vunpack.c.h.b16 %v324
    %v1324 = vunpack.c.l.b16 %v325
    %v1325 = vunpack.c.h.b16 %v325
    %v1326 = vunpack.c.l.b16 %v326
    %v1327 = vunpack.c.h.b16 %v326
    %v1328 = vunpack.c.l.b16 %v327
    %v1329 = vunpack.c.h.b16 %v327
    %v1330 = vunpack.c.l.b16 %v328
    %v1331 = vunpack.c.h.b16 %v328
    %v1332 = vunpack.c.l.b16 %v329
    %v1333 = vunpack.c.h.b16 %v329
    %v1334 = vunpack.c.l.b16 %v330
    %v1335 = vunpack.c.h.b16 %v330
    %v1336 = vunpack.c.l.b16 %v331
    %v1337 = vunpack.c.h.b16 %v331
    %v1338 = vunpack.c.l.b16 %v332
    %v1339 = vunpack.c.h.b16 %v332
    %v1340 = vunpack.c.l.b16 %v333
    %v1341 = vunpack.c.h.b16 %v333
    %v1342 = vunpack.c.l.b16 %v334
    %v1343 = vunpack.c.h.b16 %v334
    %v1344 = vunpack.c.l.b16 %v335
    %v1345 = vunpack.c.h.b16 %v335
    %v1346 = vunpack.c.l.b16 %v336
    %v1347 = vunpack.c.h.b16 %v336
    %v1348 = vunpack.c.l.b16 %v337
    %v1349 = vunpack.c.h.b16 %v337
    %v1350 = vunpack.c.l.b16 %v338
    %v1351 = vunpack.c.h.b16 %v338
    %v1352 = vunpack.c.l.b16 %v339
    %v1353 = vunpack.c.h.b16 %v339
    %v1354 = vunpack.c.l.b16 %v340
    %v1355 = vunpack.c.h.b16 %v340
    %v1356 = vunpack.c.l.b16 %v341
    %v1357 = vunpack.c.h.b16 %v341
    %v1358 = vunpack.c.l.b16 %v342
    %v1359 = vunpack.c.h.b16 %v342
    %v1360 = vunpack.c.l.b16 %v343
    %v1361 = vunpack.c.h.b16 %v343
    %v1362 = vunpack.c.l.b16 %v344
    %v1363 = vunpack.c.h.b16 %v344
    %v1364 = vunpack.c.l.b16 %v345
    %v1365 = vunpack.c.h.b16 %v345
    %v1366 = vunpack.c.l.b16 %v346
    %v1367 = vunpack.c.h.b16 %v346
    %v1368 = vunpack.c.l.b16 %v347
    %v1369 = vunpack.c.h.b16 %v347
    %v1370 = vunpack.c.l.b16 %v348
    %v1371 = vunpack.c.h.b16 %v348
    %v1372 = vunpack.c.l.b16 %v349
    %v1373 = vunpack.c.h.b16 %v349
    %v1374 = vunpack.c.l.b16 %v350
    %v1375 = vunpack.c.h.b16 %v350
    %v1376 = vunpack.c.l.b16 %v351
    %v1377 = vunpack.c.h.b16 %v351
    %v1378 = vunpack.c.l.b16 %v352
    %v1379 = vunpack.c.h.b16 %v352
    %v1380 = vunpack.c.l.b16 %v353
    %v1381 = vunpack.c.h.b16 %v353
    %v1382 = vunpack.c.l.b16 %v354
    %v1383 = vunpack.c.h.b16 %v354
    %v1384 = vunpack.c.l.b16 %v355
    %v1385 = vunpack.c.h.b16 %v355
    %v1386 = vunpack.c.l.b16 %v356
    %v1387 = vunpack.c.h.b16 %v356
    %v1388 = vunpack.c.l.b16 %v357
    %v1389 = vunpack.c.h.b16 %v357
    %v1390 = vunpack.c.l.b16 %v358
    %v1391 = vunpack.c.h.b16 %v358
    %v1392 = vunpack.c.l.b16 %v359
    %v1393 = vunpack.c.h.b16 %v359
    %v1394 = vunpack.c.l.b16 %v360
    %v1395 = vunpack.c.h.b16 %v360
    %v1396 = vunpack.c.l.b16 %v361
    %v1397 = vunpack.c.h.b16 %v361
    %v1398 = vunpack.c.l.b16 %v362
    %v1399 = vunpack.c.h.b16 %v362
    %v1400 = vunpack.c.l.b16 %v363
    %v1401 = vunpack.c.h.b16 %v363
    %v1402 = vunpack.c.l.b16 %v364
    %v1403 = vunpack.c.h.b16 %v364
    %v1404 = vunpack.c.l.b16 %v365
    %v1405 = vunpack.c.h.b16 %v365
    %v1406 = vunpack.c.l.b16 %v366
    %v1407 = vunpack.c.h.b16 %v366
    %v1408 = vunpack.c.l.b16 %v367
    %v1409 = vunpack.c.h.b16 %v367
    %v1410 = vunpack.c.l.b16 %v368
    %v1411 = vunpack.c.h.b16 %v368
    %v1412 = vunpack.c.l.b16 %v369
    %v1413 = vunpack.c.h.b16 %v369
    %v1414 = vunpack.c.l.b16 %v370
    %v1415 = vunpack.c.h.b16 %v370
    %v1416 = vunpack.c.l.b16 %v371
    %v1417 = vunpack.c.h.b16 %v371
    %v1418 = vunpack.c.l.b16 %v372
    %v1419 = vunpack.c.h.b16 %v372
    %v1420 = vunpack.c.l.b16 %v373
    %v1421 = vunpack.c.h.b16 %v373
    %v1422 = vunpack.c.l.b16 %v374
    %v1423 = vunpack.c.h.b16 %v374
    %v1424 = vunpack.c.l.b16 %v375
    %v1425 = vunpack.c.h.b16 %v375
    %v1426 = vunpack.c.l.b16 %v376
    %v1427 = vunpack.c.h.b16 %v376
    %v1428 = vunpack.c.l.b16 %v377
    %v1429 = vunpack.c.h.b16 %v377
    %v1430 = vunpack.c.l.b16 %v378
    %v1431 = vunpack.c.h.b16 %v378
    %v1432 = vunpack.c.l.b16 %v379
    %v1433 = vunpack.c.h.b16 %v379
    %v1434 = vunpack.c.l.b16 %v380
    %v1435 = vunpack.c.h.b16 %v380
    %v1436 = vunpack.c.l.b16 %v381
    %v1437 = vunpack.c.h.b16 %v381
    %v1438 = vunpack.c.l.b16 %v382
    %v1439 = vunpack.c.h.b16 %v382
    %v1440 = vunpack.c.l.b16 %v383
    %v1441 = vunpack.c.h.b16 %v383
    %v1442 = vunpack.c.l.b16 %v384
    %v1443 = vunpack.c.h.b16 %v384
    %v1444 = vunpack.c.l.b16 %v385
    %v1445 = vunpack.c.h.b16 %v385
    %v1446 = vunpack.c.l.b16 %v386
    %v1447 = vunpack.c.h.b16 %v386
    %v1448 = vunpack.c.l.b16 %v387
    %v1449 = vunpack.c.h.b16 %v387
    %v1450 = vunpack.c.l.b16 %v388
    %v1451 = vunpack.c.h.b16 %v388
    %v1452 = vunpack.c.l.b16 %v389
    %v1453 = vunpack.c.h.b16 %v389
    %v1454 = vunpack.c.l.b16 %v390
    %v1455 = vunpack.c.h.b16 %v390
    %v1456 = vunpack.c.l.b16 %v391
    %v1457 = vunpack.c.h.b16 %v391
    %v1458 = vunpack.c.l.b16 %v392
    %v1459 = vunpack.c.h.b16 %v392
    %v1460 = vunpack.c.l.b16 %v393
    %v1461 = vunpack.c.h.b16 %v393
    %v1462 = vunpack.c.l.b16 %v394
    %v1463 = vunpack.c.h.b16 %v394
    %v1464 = vunpack.c.l.b16 %v395
    %v1465 = vunpack.c.h.b16 %v395
    %v1466 = vunpack.c.l.b16 %v396
    %v1467 = vunpack.c.h.b16 %v396
    %v1468 = vunpack.c.l.b16 %v397
    %v1469 = vunpack.c.h.b16 %v397
    %v1470 = vunpack.c.l.b16 %v398
    %v1471 = vunpack.c.h.b16 %v398
    %v1472 = vunpack.c.l.b16 %v399
    %v1473 = vunpack.c.h.b16 %v399
    %v1474 = vunpack.c.l.b16 %v400
    %v1475 = vunpack.c.h.b16 %v400
    %v1476 = vunpack.c.l.b16 %v401
    %v1477 = vunpack.c.h.b16 %v401
    %v1478 = vunpack.c.l.b16 %v402
    %v1479 = vunpack.c.h.b16 %v402
    %v1480 = vunpack.c.l.b16 %v403
    %v1481 = vunpack.c.h.b16 %v403
    %v1482 = vunpack.c.l.b16 %v404
    %v1483 = vunpack.c.h.b16 %v404
    %v1484 = vunpack.c.l.b16 %v405
    %v1485 = vunpack.c.h.b16 %v405
    %v1486 = vunpack.c.l.b16 %v406
    %v1487 = vunpack.c.h.b16 %v406
    %v1488 = vunpack.c.l.b16 %v407
    %v1489 = vunpack.c.h.b16 %v407
    %v1490 = vunpack.c.l.b16 %v408
    %v1491 = vunpack.c.h.b16 %v408
    %v1492 = vunpack.c.l.b16 %v409
    %v1493 = vunpack.c.h.b16 %v409
    %v1494 = vunpack.c.l.b16 %v410
    %v1495 = vunpack.c.h.b16 %v410
    %v1496 = vunpack.c.l.b16 %v411
    %v1497 = vunpack.c.h.b16 %v411
    %v1498 = vunpack.c.l.b16 %v412
    %v1499 = vunpack.c.h.b16 %v412
    %v1500 = vunpack.c.l.b16 %v413
    %v1501 = vunpack.c.h.b16 %v413
    %v1502 = vunpack.c.l.b16 %v414
    %v1503 = vunpack.c.h.b16 %v414
    %v1504 = vunpack.c.l.b16 %v415
    %v1505 = vunpack.c.h.b16 %v415
    %v1506 = vunpack.c.l.b16 %v416
    %v1507 = vunpack.c.h.b16 %v416
    %v1508 = vunpack.c.l.b16 %v417
    %v1509 = vunpack.c.h.b16 %v417
    %v1510 = vunpack.c.l.b16 %v418
    %v1511 = vunpack.c.h.b16 %v418
    %v1512 = vunpack.c.l.b16 %v419
    %v1513 = vunpack.c.h.b16 %v419
    %v1514 = vunpack.c.l.b16 %v420
    %v1515 = vunpack.c.h.b16 %v420
    %v1516 = vunpack.c.l.b16 %v421
    %v1517 = vunpack.c.h.b16 %v421
    %v1518 = vunpack.c.l.b16 %v422
    %v1519 = vunpack.c.h.b16 %v422
    %v1520 = vunpack.c.l.b16 %v423
    %v1521 = vunpack.c.h.b16 %v423
    %v1522 = vunpack.c.l.b16 %v424
    %v1523 = vunpack.c.h.b16 %v424
    %v1524 = vunpack.c.l.b16 %v425
    %v1525 = vunpack.c.h.b16 %v425
    %v1526 = vunpack.c.l.b16 %v426
    %v1527 = vunpack.c.h.b16 %v426
    %v1528 = vunpack.c.l.b16 %v427
    %v1529 = vunpack.c.h.b16 %v427
    %v1530 = vunpack.c.l.b16 %v428
    %v1531 = vunpack.c.h.b16 %v428
    %v1532 = vunpack.c.l.b16 %v429
    %v1533 = vunpack.c.h.b16 %v429
    %v1534 = vunpack.c.l.b16 %v430
    %v1535 = vunpack.c.h.b16 %v430
    %v1536 = vunpack.c.l.b16 %v431
    %v1537 = vunpack.c.h.b16 %v431
    %v1538 = vunpack.c.l.b16 %v432
    %v1539 = vunpack.c.h.b16 %v432
    %v1540 = vunpack.c.l.b16 %v433
    %v1541 = vunpack.c.h.b16 %v433
    %v1542 = vunpack.c.l.b16 %v434
    %v1543 = vunpack.c.h.b16 %v434
    %v1544 = vunpack.c.l.b16 %v435
    %v1545 = vunpack.c.h.b16 %v435
    %v1546 = vunpack.c.l.b16 %v436
    %v1547 = vunpack.c.h.b16 %v436
    %v1548 = vunpack.c.l.b16 %v437
    %v1549 = vunpack.c.h.b16 %v437
    %v1550 = vunpack.c.l.b16 %v438
    %v1551 = vunpack.c.h.b16 %v438
    %v1552 = vunpack.c.l.b16 %v439
    %v1553 = vunpack.c.h.b16 %v439
    %v1554 = vunpack.c.l.b16 %v440
    %v1555 = vunpack.c.h.b16 %v440
    %v1556 = vunpack.c.l.b16 %v441
    %v1557 = vunpack.c.h.b16 %v441
    %v1558 = vunpack.c.l.b16 %v442
    %v1559 = vunpack.c.h.b16 %v442
    %v1560 = vunpack.c.l.b16 %v443
    %v1561 = vunpack.c.h.b16 %v443
    %v1562 = vunpack.c.l.b16 %v444
    %v1563 = vunpack.c.h.b16 %v444
    %v1564 = vunpack.c.l.b16 %v445
    %v1565 = vunpack.c.h.b16 %v445
    %v1566 = vunpack.c.l.b16 %v446
    %v1567 = vunpack.c.h.b16 %v446
    %v1568 = vunpack.c.l.b16 %v447
    %v1569 = vunpack.c.h.b16 %v447
    %v1570 = vunpack.c.l.b16 %v448
    %v1571 = vunpack.c.h.b16 %v448
    %v1572 = vunpack.c.l.b16 %v449
    %v1573 = vunpack.c.h.b16 %v449
    %v1574 = vunpack.c.l.b16 %v450
    %v1575 = vunpack.c.h.b16 %v450
    %v1576 = vunpack.c.l.b16 %v451
    %v1577 = vunpack.c.h.b16 %v451
    %v1578 = vunpack.c.l.b16 %v452
    %v1579 = vunpack.c.h.b16 %v452
    %v1580 = vunpack.c.l.b16 %v453
    %v1581 = vunpack.c.h.b16 %v453
    %v1582 = vunpack.c.l.b16 %v454
    %v1583 = vunpack.c.h.b16 %v454
    %v1584 = vunpack.c.l.b16 %v455
    %v1585 = vunpack.c.h.b16 %v455
    %v1586 = vunpack.c.l.b16 %v456
    %v1587 = vunpack.c.h.b16 %v456
    %v1588 = vunpack.c.l.b16 %v457
    %v1589 = vunpack.c.h.b16 %v457
    %v1590 = vunpack.c.l.b16 %v458
    %v1591 = vunpack.c.h.b16 %v458
    %v1592 = vunpack.c.l.b16 %v459
    %v1593 = vunpack.c.h.b16 %v459
    %v1594 = vpack.c.b16 %v874, %v866
    %v1595 = vpack.c.b16 %v875, %v867
    %v1596 = vpack.c.b16 %v876, %v868
    %v1597 = vpack.c.b16 %v877, %v869
    %v1598 = vpack.c.b16 %v878, %v870
    %v1599 = vpack.c.b16 %v879, %v871
    %v1600 = vpack.c.b16 %v880, %v872
    %v1601 = vpack.c.b16 %v881, %v873
    %v1602 = vpack.c.b16 %v890, %v882
    %v1603 = vpack.c.b16 %v891, %v883
    %v1604 = vpack.c.b16 %v892, %v884
    %v1605 = vpack.c.b16 %v893, %v885
    %v1606 = vpack.c.b16 %v894, %v886
    %v1607 = vpack.c.b16 %v895, %v887
    %v1608 = vpack.c.b16 %v896, %v888
    %v1609 = vpack.c.b16 %v897, %v889
    %v1610 = vpack.c.b16 %v906, %v898
    %v1611 = vpack.c.b16 %v907, %v899
    %v1612 = vpack.c.b16 %v908, %v900
    %v1613 = vpack.c.b16 %v909, %v901
    %v1614 = vpack.c.b16 %v910, %v902
    %v1615 = vpack.c.b16 %v911, %v903
    %v1616 = vpack.c.b16 %v912, %v904
    %v1617 = vpack.c.b16 %v913, %v905
    %v1618 = vpack.c.b16 %v922, %v914
    %v1619 = vpack.c.b16 %v923, %v915
    %v1620 = vpack.c.b16 %v924, %v916
    %v1621 = vpack.c.b16 %v925, %v917
    %v1622 = vpack.c.b16 %v926, %v918
    %v1623 = vpack.c.b16 %v927, %v919
    %v1624 = vpack.c.b16 %v928, %v920
    %v1625 = vpack.c.b16 %v929, %v921
    %v1626 = vpack.c.b16 %v938, %v930
    %v1627 = vpack.c.b16 %v939, %v931
    %v1628 = vpack.c.b16 %v940, %v932
    %v1629 = vpack.c.b16 %v941, %v933
    %v1630 = vpack.c.b16 %v942, %v934
    %v1631 = vpack.c.b16 %v943, %v935
    %v1632 = vpack.c.b16 %v944, %v936
    %v1633 = vpack.c.b16 %v945, %v937
    %v1634 = vpack.c.b16 %v954, %v946
    %v1635 = vpack.c.b16 %v955, %v947
    %v1636 = vpack.c.b16 %v956, %v948
    %v1637 = vpack.c.b16 %v957, %v949
    %v1638 = vpack.c.b16 %v958, %v950
    %v1639 = vpack.c.b16 %v959, %v951
    %v1640 = vpack.c.b16 %v960, %v952
    %v1641 = vpack.c.b16 %v961, %v953
    %v1642 = vpack.c.b16 %v970, %v962
    %v1643 = vpack.c.b16 %v971, %v963
    %v1644 = vpack.c.b16 %v972, %v964
    %v1645 = vpack.c.b16 %v973, %v965
    %v1646 = vpack.c.b16 %v974, %v966
    %v1647 = vpack.c.b16 %v975, %v967
    %v1648 = vpack.c.b16 %v976, %v968
    %v1649 = vpack.c.b16 %v977, %v969
    %v1650 = vpack.c.b16 %v986, %v978
    %v1651 = vpack.c.b16 %v987, %v979
    %v1652 = vpack.c.b16 %v988, %v980
    %v1653 = vpack.c.b16 %v989, %v981
    %v1654 = vpack.c.b16 %v990, %v982
    %v1655 = vpack.c.b16 %v991, %v983
    %v1656 = vpack.c.b16 %v992, %v984
    %v1657 = vpack.c.b16 %v993, %v985
    %v1658 = vpack.c.b16 %v1002, %v994
    %v1659 = vpack.c.b16 %v1003, %v995
    %v1660 = vpack.c.b16 %v1004, %v996
    %v1661 = vpack.c.b16 %v1005, %v997
    %v1662 = vpack.c.b16 %v1006, %v998
    %v1663 = vpack.c.b16 %v1007, %v999
    %v1664 = vpack.c.b16 %v1008, %v1000
    %v1665 = vpack.c.b16 %v1009, %v1001
    %v1666 = vpack.c.b16 %v1018, %v1010
    %v1667 = vpack.c.b16 %v1019, %v1011
    %v1668 = vpack.c.b16 %v1020, %v1012
    %v1669 = vpack.c.b16 %v1021, %v1013
    %v1670 = vpack.c.b16 %v1022, %v1014
    %v1671 = vpack.c.b16 %v1023, %v1015
    %v1672 = vpack.c.b16 %v1024, %v1016
    %v1673 = vpack.c.b16 %v1025, %v1017
    %v1674 = vpack.c.b16 %v1034, %v1026
    %v1675 = vpack.c.b16 %v1035, %v1027
    %v1676 = vpack.c.b16 %v1036, %v1028
    %v1677 = vpack.c.b16 %v1037, %v1029
    %v1678 = vpack.c.b16 %v1038, %v1030
    %v1679 = vpack.c.b16 %v1039, %v1031
    %v1680 = vpack.c.b16 %v1040, %v1032
    %v1681 = vpack.c.b16 %v1041, %v1033
    %v1682 = vpack.c.b16 %v1050, %v1042
    %v1683 = vpack.c.b16 %v1051, %v1043
    %v1684 = vpack.c.b16 %v1052, %v1044
    %v1685 = vpack.c.b16 %v1053, %v1045
    %v1686 = vpack.c.b16 %v1054, %v1046
    %v1687 = vpack.c.b16 %v1055, %v1047
    %v1688 = vpack.c.b16 %v1056, %v1048
    %v1689 = vpack.c.b16 %v1057, %v1049
    %v1690 = vpack.c.b16 %v1066, %v1058
    %v1691 = vpack.c.b16 %v1067, %v1059
    %v1692 = vpack.c.b16 %v1068, %v1060
    %v1693 = vpack.c.b16 %v1069, %v1061
    %v1694 = vpack.c.b16 %v1070, %v1062
    %v1695 = vpack.c.b16 %v1071, %v1063
    %v1696 = vpack.c.b16 %v1072, %v1064
    %v1697 = vpack.c.b16 %v1073, %v1065
    %v1698 = vpack.c.b16 %v1082, %v1074
    %v1699 = vpack.c.b16 %v1083, %v1075
    %v1700 = vpack.c.b16 %v1084, %v1076
    %v1701 = vpack.c.b16 %v1085, %v1077
    %v1702 = vpack.c.b16 %v1086, %v1078
    %v1703 = vpack.c.b16 %v1087, %v1079
    %v1704 = vpack.c.b16 %v1088, %v1080
    %v1705 = vpack.c.b16 %v1089, %v1081
    %v1706 = vpack.c.b16 %v1098, %v1090
    %v1707 = vpack.c.b16 %v1099, %v1091
    %v1708 = vpack.c.b16 %v1100, %v1092
    %v1709 = vpack.c.b16 %v1101, %v1093
    %v1710 = vpack.c.b16 %v1102, %v1094
    %v1711 = vpack.c.b16 %v1103, %v1095
    %v1712 = vpack.c.b16 %v1104, %v1096
    %v1713 = vpack.c.b16 %v1105, %v1097
    %v1714 = vpack.c.b16 %v1114, %v1106
    %v1715 = vpack.c.b16 %v1115, %v1107
    %v1716 = vpack.c.b16 %v1116, %v1108
    %v1717 = vpack.c.b16 %v1117, %v1109
    %v1718 = vpack.c.b16 %v1118, %v1110
    %v1719 = vpack.c.b16 %v1119, %v1111
    %v1720 = vpack.c.b16 %v1120, %v1112
    %v1721 = vpack.c.b16 %v1121, %v1113
    %v1722 = vpack.c.b16 %v1130, %v1122
    %v1723 = vpack.c.b16 %v1131, %v1123
    %v1724 = vpack.c.b16 %v1132, %v1124
    %v1725 = vpack.c.b16 %v1133, %v1125
    %v1726 = vpack.c.b16 %v1134, %v1126
    %v1727 = vpack.c.b16 %v1135, %v1127
    %v1728 = vpack.c.b16 %v1136, %v1128
    %v1729 = vpack.c.b16 %v1137, %v1129
    %v1730 = vpack.c.b16 %v1146, %v1138
    %v1731 = vpack.c.b16 %v1147, %v1139
    %v1732 = vpack.c.b16 %v1148, %v1140
    %v1733 = vpack.c.b16 %v1149, %v1141
    %v1734 = vpack.c.b16 %v1150, %v1142
    %v1735 = vpack.c.b16 %v1151, %v1143
    %v1736 = vpack.c.b16 %v1152, %v1144
    %v1737 = vpack.c.b16 %v1153, %v1145
    %v1738 = vpack.c.b16 %v1162, %v1154
    %v1739 = vpack.c.b16 %v1163, %v1155
    %v1740 = vpack.c.b16 %v1164, %v1156
    %v1741 = vpack.c.b16 %v1165, %v1157
    %v1742 = vpack.c.b16 %v1166, %v1158
    %v1743 = vpack.c.b16 %v1167, %v1159
    %v1744 = vpack.c.b16 %v1168, %v1160
    %v1745 = vpack.c.b16 %v1169, %v1161
    %v1746 = vpack.c.b16 %v1178, %v1170
    %v1747 = vpack.c.b16 %v1179, %v1171
    %v1748 = vpack.c.b16 %v1180, %v1172
    %v1749 = vpack.c.b16 %v1181, %v1173
    %v1750 = vpack.c.b16 %v1182, %v1174
    %v1751 = vpack.c.b16 %v1183, %v1175
    %v1752 = vpack.c.b16 %v1184, %v1176
    %v1753 = vpack.c.b16 %v1185, %v1177
    %v1754 = vpack.c.b16 %v1194, %v1186
    %v1755 = vpack.c.b16 %v1195, %v1187
    %v1756 = vpack.c.b16 %v1196, %v1188
    %v1757 = vpack.c.b16 %v1197, %v1189
    %v1758 = vpack.c.b16 %v1198, %v1190
    %v1759 = vpack.c.b16 %v1199, %v1191
    %v1760 = vpack.c.b16 %v1200, %v1192
    %v1761 = vpack.c.b16 %v1201, %v1193
    %v1762 = vpack.c.b16 %v1210, %v1202
    %v1763 = vpack.c.b16 %v1211, %v1203
    %v1764 = vpack.c.b16 %v1212, %v1204
    %v1765 = vpack.c.b16 %v1213, %v1205
    %v1766 = vpack.c.b16 %v1214, %v1206
    %v1767 = vpack.c.b16 %v1215, %v1207
    %v1768 = vpack.c.b16 %v1216, %v1208
    %v1769 = vpack.c.b16 %v1217, %v1209
    %v1770 = vpack.c.b16 %v1226, %v1218
    %v1771 = vpack.c.b16 %v1227, %v1219
    %v1772 = vpack.c.b16 %v1228, %v1220
    %v1773 = vpack.c.b16 %v1229, %v1221
    %v1774 = vpack.c.b16 %v1230, %v1222
    %v1775 = vpack.c.b16 %v1231, %v1223
    %v1776 = vpack.c.b16 %v1232, %v1224
    %v1777 = vpack.c.b16 %v1233, %v1225
    %v1778 = vpack.c.b16 %v1242, %v1234
    %v1779 = vpack.c.b16 %v1243, %v1235
    %v1780 = vpack.c.b16 %v1244, %v1236
    %v1781 = vpack.c.b16 %v1245, %v1237
    %v1782 = vpack.c.b16 %v1246, %v1238
    %v1783 = vpack.c.b16 %v1247, %v1239
    %v1784 = vpack.c.b16 %v1248, %v1240
    %v1785 = vpack.c.b16 %v1249, %v1241
    %v1786 = vpack.c.b16 %v1258, %v1250
    %v1787 = vpack.c.b16 %v1259, %v1251
    %v1788 = vpack.c.b16 %v1260, %v1252
    %v1789 = vpack.c.b16 %v1261, %v1253
    %v1790 = vpack.c.b16 %v1262, %v1254
    %v1791 = vpack.c.b16 %v1263, %v1255
    %v1792 = vpack.c.b16 %v1264, %v1256
    %v1793 = vpack.c.b16 %v1265, %v1257
    %v1794 = vpack.c.b16 %v1274, %v1266
    %v1795 = vpack.c.b16 %v1275, %v1267
    %v1796 = vpack.c.b16 %v1276, %v1268
    %v1797 = vpack.c.b16 %v1277, %v1269
    %v1798 = vpack.c.b16 %v1278, %v1270
    %v1799 = vpack.c.b16 %v1279, %v1271
    %v1800 = vpack.c.b16 %v1280, %v1272
    %v1801 = vpack.c.b16 %v1281, %v1273
    %v1802 = vpack.c.b16 %v1290, %v1282
    %v1803 = vpack.c.b16 %v1291, %v1283
    %v1804 = vpack.c.b16 %v1292, %v1284
    %v1805 = vpack.c.b16 %v1293, %v1285
    %v1806 = vpack.c.b16 %v1294, %v1286
    %v1807 = vpack.c.b16 %v1295, %v1287
    %v1808 = vpack.c.b16 %v1296, %v1288
    %v1809 = vpack.c.b16 %v1297, %v1289
    %v1810 = vpack.c.b16 %v1306, %v1298
    %v1811 = vpack.c.b16 %v1307, %v1299
    %v1812 = vpack.c.b16 %v1308, %v1300
    %v1813 = vpack.c.b16 %v1309, %v1301
    %v1814 = vpack.c.b16 %v1310, %v1302
    %v1815 = vpack.c.b16 %v1311, %v1303
    %v1816 = vpack.c.b16 %v1312, %v1304
    %v1817 = vpack.c.b16 %v1313, %v1305
    %v1818 = vpack.c.b16 %v1322, %v1314
    %v1819 = vpack.c.b16 %v1323, %v1315
    %v1820 = vpack.c.b16 %v1324, %v1316
    %v1821 = vpack.c.b16 %v1325, %v1317
    %v1822 = vpack.c.b16 %v1326, %v1318
    %v1823 = vpack.c.b16 %v1327, %v1319
    %v1824 = vpack.c.b16 %v1328, %v1320
    %v1825 = vpack.c.b16 %v1329, %v1321
    %v1826 = vpack.c.b16 %v1338, %v1330
    %v1827 = vpack.c.b16 %v1339, %v1331
    %v1828 = vpack.c.b16 %v1340, %v1332
    %v1829 = vpack.c.b16 %v1341, %v1333
    %v1830 = vpack.c.b16 %v1342, %v1334
    %v1831 = vpack.c.b16 %v1343, %v1335
    %v1832 = vpack.c.b16 %v1344, %v1336
    %v1833 = vpack.c.b16 %v1345, %v1337
    %v1834 = vpack.c.b16 %v1354, %v1346
    %v1835 = vpack.c.b16 %v1355, %v1347
    %v1836 = vpack.c.b16 %v1356, %v1348
    %v1837 = vpack.c.b16 %v1357, %v1349
    %v1838 = vpack.c.b16 %v1358, %v1350
    %v1839 = vpack.c.b16 %v1359, %v1351
    %v1840 = vpack.c.b16 %v1360, %v1352
    %v1841 = vpack.c.b16 %v1361, %v1353
    %v1842 = vpack.c.b16 %v1370, %v1362
    %v1843 = vpack.c.b16 %v1371, %v1363
    %v1844 = vpack.c.b16 %v1372, %v1364
    %v1845 = vpack.c.b16 %v1373, %v1365
    %v1846 = vpack.c.b16 %v1374, %v1366
    %v1847 = vpack.c.b16 %v1375, %v1367
    %v1848 = vpack.c.b16 %v1376, %v1368
    %v1849 = vpack.c.b16 %v1377, %v1369
    %v1850 = vpack.c.b16 %v1386, %v1378
    %v1851 = vpack.c.b16 %v1387, %v1379
    %v1852 = vpack.c.b16 %v1388, %v1380
    %v1853 = vpack.c.b16 %v1389, %v1381
    %v1854 = vpack.c.b16 %v1390, %v1382
    %v1855 = vpack.c.b16 %v1391, %v1383
    %v1856 = vpack.c.b16 %v1392, %v1384
    %v1857 = vpack.c.b16 %v1393, %v1385
    %v1858 = vpack.c.b16 %v1402, %v1394
    %v1859 = vpack.c.b16 %v1403, %v1395
    %v1860 = vpack.c.b16 %v1404, %v1396
    %v1861 = vpack.c.b16 %v1405, %v1397
    %v1862 = vpack.c.b16 %v1406, %v1398
    %v1863 = vpack.c.b16 %v1407, %v1399
    %v1864 = vpack.c.b16 %v1408, %v1400
    %v1865 = vpack.c.b16 %v1409, %v1401
    %v1866 = vpack.c.b16 %v1418, %v1410
    %v1867 = vpack.c.b16 %v1419, %v1411
    %v1868 = vpack.c.b16 %v1420, %v1412
    %v1869 = vpack.c.b16 %v1421, %v1413
    %v1870 = vpack.c.b16 %v1422, %v1414
    %v1871 = vpack.c.b16 %v1423, %v1415
    %v1872 = vpack.c.b16 %v1424, %v1416
    %v1873 = vpack.c.b16 %v1425, %v1417
    %v1874 = vpack.c.b16 %v1434, %v1426
    %v1875 = vpack.c.b16 %v1435, %v1427
    %v1876 = vpack.c.b16 %v1436, %v1428
    %v1877 = vpack.c.b16 %v1437, %v1429
    %v1878 = vpack.c.b16 %v1438, %v1430
    %v1879 = vpack.c.b16 %v1439, %v1431
    %v1880 = vpack.c.b16 %v1440, %v1432
    %v1881 = vpack.c.b16 %v1441, %v1433
    %v1882 = vpack.c.b16 %v1450, %v1442
    %v1883 = vpack.c.b16 %v1451, %v1443
    %v1884 = vpack.c.b16 %v1452, %v1444
    %v1885 = vpack.c.b16 %v1453, %v1445
    %v1886 = vpack.c.b16 %v1454, %v1446
    %v1887 = vpack.c.b16 %v1455, %v1447
    %v1888 = vpack.c.b16 %v1456, %v1448
    %v1889 = vpack.c.b16 %v1457, %v1449
    %v1890 = vpack.c.b16 %v1466, %v1458
    %v1891 = vpack.c.b16 %v1467, %v1459
    %v1892 = vpack.c.b16 %v1468, %v1460
    %v1893 = vpack.c.b16 %v1469, %v1461
    %v1894 = vpack.c.b16 %v1470, %v1462
    %v1895 = vpack.c.b16 %v1471, %v1463
    %v1896 = vpack.c.b16 %v1472, %v1464
    %v1897 = vpack.c.b16 %v1473, %v1465
    %v1898 = vpack.c.b16 %v1482, %v1474
    %v1899 = vpack.c.b16 %v1483, %v1475
    %v1900 = vpack.c.b16 %v1484, %v1476
    %v1901 = vpack.c.b16 %v1485, %v1477
    %v1902 = vpack.c.b16 %v1486, %v1478
    %v1903 = vpack.c.b16 %v1487, %v1479
    %v1904 = vpack.c.b16 %v1488, %v1480
    %v1905 = vpack.c.b16 %v1489, %v1481
    %v1906 = vpack.c.b16 %v1498, %v1490
    %v1907 = vpack.c.b16 %v1499, %v1491
    %v1908 = vpack.c.b16 %v1500, %v1492
    %v1909 = vpack.c.b16 %v1501, %v1493
    %v1910 = vpack.c.b16 %v1502, %v1494
    %v1911 = vpack.c.b16 %v1503, %v1495
    %v1912 = vpack.c.b16 %v1504, %v1496
    %v1913 = vpack.c.b16 %v1505, %v1497
    %v1914 = vpack.c.b16 %v1514, %v1506
    %v1915 = vpack.c.b16 %v1515, %v1507
    %v1916 = vpack.c.b16 %v1516, %v1508
    %v1917 = vpack.c.b16 %v1517, %v1509
    %v1918 = vpack.c.b16 %v1518, %v1510
    %v1919 = vpack.c.b16 %v1519, %v1511
    %v1920 = vpack.c.b16 %v1520, %v1512
    %v1921 = vpack.c.b16 %v1521, %v1513
    %v1922 = vpack.c.b16 %v1530, %v1522
    %v1923 = vpack.c.b16 %v1531, %v1523
    %v1924 = vpack.c.b16 %v1532, %v1524
    %v1925 = vpack.c.b16 %v1533, %v1525
    %v1926 = vpack.c.b16 %v1534, %v1526
    %v1927 = vpack.c.b16 %v1535, %v1527
    %v1928 = vpack.c.b16 %v1536, %v1528
    %v1929 = vpack.c.b16 %v1537, %v1529
    %v1930 = vpack.c.b16 %v1546, %v1538
    %v1931 = vpack.c.b16 %v1547, %v1539
    %v1932 = vpack.c.b16 %v1548, %v1540
    %v1933 = vpack.c.b16 %v1549, %v1541
    %v1934 = vpack.c.b16 %v1550, %v1542
    %v1935 = vpack.c.b16 %v1551, %v1543
    %v1936 = vpack.c.b16 %v1552, %v1544
    %v1937 = vpack.c.b16 %v1553, %v1545
    %v1938 = vpack.c.b16 %v1562, %v1554
    %v1939 = vpack.c.b16 %v1563, %v1555
    %v1940 = vpack.c.b16 %v1564, %v1556
    %v1941 = vpack.c.b16 %v1565, %v1557
    %v1942 = vpack.c.b16 %v1566, %v1558
    %v1943 = vpack.c.b16 %v1567, %v1559
    %v1944 = vpack.c.b16 %v1568, %v1560
    %v1945 = vpack.c.b16 %v1569, %v1561
    %v1946 = vpack.c.b16 %v1578, %v1570
    %v1947 = vpack.c.b16 %v1579, %v1571
    %v1948 = vpack.c.b16 %v1580, %v1572
    %v1949 = vpack.c.b16 %v1581, %v1573
    %v1950 = vpack.c.b16 %v1582, %v1574
    %v1951 = vpack.c.b16 %v1583, %v1575
    %v1952 = vpack.c.b16 %v1584, %v1576
    %v1953 = vpack.c.b16 %v1585, %v1577
    %v1954 = vpack.c.b16 %v1586, %v1586
    %v1955 = vpack.c.b16 %v1587, %v1587
    %v1956 = vpack.c.b16 %v1588, %v1588
    %v1957 = vpack.c.b16 %v1589, %v1589
    %v1958 = vpack.c.b16 %v1590, %v1590
    %v1959 = vpack.c.b16 %v1591, %v1591
    %v1960 = vpack.c.b16 %v1592, %v1592
    %v1961 = vpack.c.b16 %v1593, %v1593
    %vm2322 = vcmask 703488
    %v2324 = vsel %vm2322, %v95, 0
    %vm2326 = vcmask 1042432
    %v2328 = vsel %vm2326, %v1954, 0
    %v2331 = vsel %vm2326, %v1955, 0
    %v2334 = vsel %vm2326, %v1956, 0
    %v2337 = vsel %vm2326, %v1957, 0
    %v2340 = vsel %vm2326, %v1958, 0
    %v2343 = vsel %vm2326, %v1959, 0
    %v2346 = vsel %vm2326, %v1960, 0
    %v2349 = vsel %vm2326, %v1961, 0
    %2351 = vmatprep.subr.bf16.mxu0 %v1595
    %2352 = vmatpush1.bf16.msra.mxu0 %v1594
    %2353 = vmatprep.subr.bf16.mxu0 %v1603
    %2354 = vmatpush1.bf16.msra.mxu0 %v1602
    %2355 = vmatprep.subr.bf16.mxu0 %v1611
    %2356 = vmatpush1.bf16.msra.mxu0 %v1610
    %2357 = vmatprep.subr.bf16.mxu0 %v1619
    %2358 = vmatpush1.bf16.msra.mxu0 %v1618
    %2359 = vmatprep.subr.bf16.mxu0 %v1627
    %2360 = vmatpush1.bf16.msra.mxu0 %v1626
    %2361 = vmatprep.subr.bf16.mxu0 %v1635
    %2362 = vmatpush1.bf16.msra.mxu0 %v1634
    %2363 = vmatprep.subr.bf16.mxu0 %v1643
    %2364 = vmatpush1.bf16.msra.mxu0 %v1642
    %2365 = vmatprep.subr.bf16.mxu0 %v1651
    %2366 = vmatpush1.bf16.msra.mxu0 %v1650
    %2367 = vmatprep.subr.bf16.mxu0 %v1659
    %2368 = vmatpush1.bf16.msra.mxu0 %v1658
    %2369 = vmatprep.subr.bf16.mxu0 %v1667
    %2370 = vmatpush1.bf16.msra.mxu0 %v1666
    %2371 = vmatprep.subr.bf16.mxu0 %v1675
    %2372 = vmatpush1.bf16.msra.mxu0 %v1674
    %2373 = vmatprep.subr.bf16.mxu0 %v1683
    %2374 = vmatpush1.bf16.msra.mxu0 %v1682
    %2375 = vmatprep.subr.bf16.mxu0 %v1691
    %2376 = vmatpush1.bf16.msra.mxu0 %v1690
    %2377 = vmatprep.subr.bf16.mxu0 %v1699
    %2378 = vmatpush1.bf16.msra.mxu0 %v1698
    %2379 = vmatprep.subr.bf16.mxu0 %v1707
    %2380 = vmatpush1.bf16.msra.mxu0 %v1706
    %2381 = vmatprep.subr.bf16.mxu0 %v1715
    %2382 = vmatpush1.bf16.msra.mxu0 %v1714
    %2383 = vmatprep.mubr.bf16.mxu0 %v91
    %2384 = vmatmul.mubr.bf16.gmra.mrb[0].mxu0 %v90
    %v2385 = vpop.f32.mrb[0].mxu0
    %v2386 = vadd.f32 %v465, %v2385
    %v2387 = vpop.f32.mrb[0].mxu0
    %v2388 = vadd.f32 %v469, %v2387
    %v2389 = vpop.f32.mrb[0].mxu0
    %v2390 = vpop.f32.mrb[0].mxu0
    %2391 = vdwg.mxu0
    %2392 = vmatprep.subr.bf16.mxu0 %v1723
    %2393 = vmatpush1.bf16.msra.mxu0 %v1722
    %2394 = vmatprep.subr.bf16.mxu0 %v1731
    %2395 = vmatpush1.bf16.msra.mxu0 %v1730
    %2396 = vmatprep.subr.bf16.mxu0 %v1739
    %2397 = vmatpush1.bf16.msra.mxu0 %v1738
    %2398 = vmatprep.subr.bf16.mxu0 %v1747
    %2399 = vmatpush1.bf16.msra.mxu0 %v1746
    %2400 = vmatprep.subr.bf16.mxu0 %v1755
    %2401 = vmatpush1.bf16.msra.mxu0 %v1754
    %2402 = vmatprep.subr.bf16.mxu0 %v1763
    %2403 = vmatpush1.bf16.msra.mxu0 %v1762
    %2404 = vmatprep.subr.bf16.mxu0 %v1771
    %2405 = vmatpush1.bf16.msra.mxu0 %v1770
    %2406 = vmatprep.subr.bf16.mxu0 %v1779
    %2407 = vmatpush1.bf16.msra.mxu0 %v1778
    %2408 = vmatprep.subr.bf16.mxu0 %v1787
    %2409 = vmatpush1.bf16.msra.mxu0 %v1786
    %2410 = vmatprep.subr.bf16.mxu0 %v1795
    %2411 = vmatpush1.bf16.msra.mxu0 %v1794
    %2412 = vmatprep.subr.bf16.mxu0 %v1803
    %2413 = vmatpush1.bf16.msra.mxu0 %v1802
    %2414 = vmatprep.subr.bf16.mxu0 %v1811
    %2415 = vmatpush1.bf16.msra.mxu0 %v1810
    %2416 = vmatprep.subr.bf16.mxu0 %v1819
    %2417 = vmatpush1.bf16.msra.mxu0 %v1818
    %2418 = vmatprep.subr.bf16.mxu0 %v1827
    %2419 = vmatpush1.bf16.msra.mxu0 %v1826
    %2420 = vmatprep.subr.bf16.mxu0 %v1835
    %2421 = vmatpush1.bf16.msra.mxu0 %v1834
    %2422 = vmatprep.subr.bf16.mxu0 %v1843
    %2423 = vmatpush1.bf16.msra.mxu0 %v1842
    %2424 = vmatprep.mubr.bf16.mxu0 %v93
    %2425 = vmatmul.mubr.bf16.gmra.mrb[0].mxu0 %v92
    %v2426 = vpop.f32.mrb[0].mxu0
    %v2427 = vadd.f32 %v2386, %v2426
    %v2428 = vpop.f32.mrb[0].mxu0
    %v2429 = vadd.f32 %v2388, %v2428
    %v2430 = vpop.f32.mrb[0].mxu0
    %v2431 = vpop.f32.mrb[0].mxu0
    %2432 = vdwg.mxu0
    %2433 = vmatprep.subr.bf16.mxu0 %v1851
    %2434 = vmatpush1.bf16.msra.mxu0 %v1850
    %2435 = vmatprep.subr.bf16.mxu0 %v1859
    %2436 = vmatpush1.bf16.msra.mxu0 %v1858
    %2437 = vmatprep.subr.bf16.mxu0 %v1867
    %2438 = vmatpush1.bf16.msra.mxu0 %v1866
    %2439 = vmatprep.subr.bf16.mxu0 %v1875
    %2440 = vmatpush1.bf16.msra.mxu0 %v1874
    %2441 = vmatprep.subr.bf16.mxu0 %v1883
    %2442 = vmatpush1.bf16.msra.mxu0 %v1882
    %2443 = vmatprep.subr.bf16.mxu0 %v1891
    %2444 = vmatpush1.bf16.msra.mxu0 %v1890
    %2445 = vmatprep.subr.bf16.mxu0 %v1899
    %2446 = vmatpush1.bf16.msra.mxu0 %v1898
    %2447 = vmatprep.subr.bf16.mxu0 %v1907
    %2448 = vmatpush1.bf16.msra.mxu0 %v1906
    %2449 = vmatprep.subr.bf16.mxu0 %v1915
    %2450 = vmatpush1.bf16.msra.mxu0 %v1914
    %2451 = vmatprep.subr.bf16.mxu0 %v1923
    %2452 = vmatpush1.bf16.msra.mxu0 %v1922
    %2453 = vmatprep.subr.bf16.mxu0 %v1931
    %2454 = vmatpush1.bf16.msra.mxu0 %v1930
    %2455 = vmatprep.subr.bf16.mxu0 %v1939
    %2456 = vmatpush1.bf16.msra.mxu0 %v1938
    %2457 = vmatprep.subr.bf16.mxu0 %v1947
    %2458 = vmatpush1.bf16.msra.mxu0 %v1946
    %2459 = vmatprep.subr.bf16.mxu0 %v2331
    %2460 = vmatpush1.bf16.msra.mxu0 %v2328
    %2461 = vmatprep.subr.bf16.mxu0 0
    %2462 = vmatpush1.bf16.msra.mxu0 0
    %2463 = vmatprep.subr.bf16.mxu0 0
    %2464 = vmatpush1.bf16.msra.mxu0 0
    %2465 = vmatprep.mubr.bf16.mxu0 %v2324
    %2466 = vmatmul.mubr.bf16.gmra.mrb[0].mxu0 %v94
    %v2467 = vpop.f32.mrb[0].mxu0
    %v2468 = vadd.f32 %v2427, %v2467
    %v2469 = vpop.f32.mrb[0].mxu0
    %v2470 = vadd.f32 %v2429, %v2469
    %v2471 = vpop.f32.mrb[0].mxu0
    %v2472 = vpop.f32.mrb[0].mxu0
    %2473 = vdwg.mxu0
    %2474 = vmatprep.subr.bf16.mxu0 %v1597
    %2475 = vmatpush1.bf16.msra.mxu0 %v1596
    %2476 = vmatprep.subr.bf16.mxu0 %v1605
    %2477 = vmatpush1.bf16.msra.mxu0 %v1604
    %2478 = vmatprep.subr.bf16.mxu0 %v1613
    %2479 = vmatpush1.bf16.msra.mxu0 %v1612
    %2480 = vmatprep.subr.bf16.mxu0 %v1621
    %2481 = vmatpush1.bf16.msra.mxu0 %v1620
    %2482 = vmatprep.subr.bf16.mxu0 %v1629
    %2483 = vmatpush1.bf16.msra.mxu0 %v1628
    %2484 = vmatprep.subr.bf16.mxu0 %v1637
    %2485 = vmatpush1.bf16.msra.mxu0 %v1636
    %2486 = vmatprep.subr.bf16.mxu0 %v1645
    %2487 = vmatpush1.bf16.msra.mxu0 %v1644
    %2488 = vmatprep.subr.bf16.mxu0 %v1653
    %2489 = vmatpush1.bf16.msra.mxu0 %v1652
    %2490 = vmatprep.subr.bf16.mxu0 %v1661
    %2491 = vmatpush1.bf16.msra.mxu0 %v1660
    %2492 = vmatprep.subr.bf16.mxu0 %v1669
    %2493 = vmatpush1.bf16.msra.mxu0 %v1668
    %2494 = vmatprep.subr.bf16.mxu0 %v1677
    %2495 = vmatpush1.bf16.msra.mxu0 %v1676
    %2496 = vmatprep.subr.bf16.mxu0 %v1685
    %2497 = vmatpush1.bf16.msra.mxu0 %v1684
    %2498 = vmatprep.subr.bf16.mxu0 %v1693
    %2499 = vmatpush1.bf16.msra.mxu0 %v1692
    %2500 = vmatprep.subr.bf16.mxu0 %v1701
    %2501 = vmatpush1.bf16.msra.mxu0 %v1700
    %2502 = vmatprep.subr.bf16.mxu0 %v1709
    %2503 = vmatpush1.bf16.msra.mxu0 %v1708
    %2504 = vmatprep.subr.bf16.mxu0 %v1717
    %2505 = vmatpush1.bf16.msra.mxu0 %v1716
    %2506 = vmatprep.mubr.bf16.mxu0 %v91
    %2507 = vmatmul.mubr.bf16.gmra.mrb[0].mxu0 %v90
    %v2508 = vpop.f32.mrb[0].mxu0
    %v2509 = vadd.f32 %v473, %v2508
    %v2510 = vpop.f32.mrb[0].mxu0
    %v2511 = vadd.f32 %v477, %v2510
    %v2512 = vpop.f32.mrb[0].mxu0
    %v2513 = vpop.f32.mrb[0].mxu0
    %2514 = vdwg.mxu0
    %2515 = vmatprep.subr.bf16.mxu0 %v1725
    %2516 = vmatpush1.bf16.msra.mxu0 %v1724
    %2517 = vmatprep.subr.bf16.mxu0 %v1733
    %2518 = vmatpush1.bf16.msra.mxu0 %v1732
    %2519 = vmatprep.subr.bf16.mxu0 %v1741
    %2520 = vmatpush1.bf16.msra.mxu0 %v1740
    %2521 = vmatprep.subr.bf16.mxu0 %v1749
    %2522 = vmatpush1.bf16.msra.mxu0 %v1748
    %2523 = vmatprep.subr.bf16.mxu0 %v1757
    %2524 = vmatpush1.bf16.msra.mxu0 %v1756
    %2525 = vmatprep.subr.bf16.mxu0 %v1765
    %2526 = vmatpush1.bf16.msra.mxu0 %v1764
    %2527 = vmatprep.subr.bf16.mxu0 %v1773
    %2528 = vmatpush1.bf16.msra.mxu0 %v1772
    %2529 = vmatprep.subr.bf16.mxu0 %v1781
    %2530 = vmatpush1.bf16.msra.mxu0 %v1780
    %2531 = vmatprep.subr.bf16.mxu0 %v1789
    %2532 = vmatpush1.bf16.msra.mxu0 %v1788
    %2533 = vmatprep.subr.bf16.mxu0 %v1797
    %2534 = vmatpush1.bf16.msra.mxu0 %v1796
    %2535 = vmatprep.subr.bf16.mxu0 %v1805
    %2536 = vmatpush1.bf16.msra.mxu0 %v1804
    %2537 = vmatprep.subr.bf16.mxu0 %v1813
    %2538 = vmatpush1.bf16.msra.mxu0 %v1812
    %2539 = vmatprep.subr.bf16.mxu0 %v1821
    %2540 = vmatpush1.bf16.msra.mxu0 %v1820
    %2541 = vmatprep.subr.bf16.mxu0 %v1829
    %2542 = vmatpush1.bf16.msra.mxu0 %v1828
    %2543 = vmatprep.subr.bf16.mxu0 %v1837
    %2544 = vmatpush1.bf16.msra.mxu0 %v1836
    %2545 = vmatprep.subr.bf16.mxu0 %v1845
    %2546 = vmatpush1.bf16.msra.mxu0 %v1844
    %2547 = vmatprep.mubr.bf16.mxu0 %v93
    %2548 = vmatmul.mubr.bf16.gmra.mrb[0].mxu0 %v92
    %v2549 = vpop.f32.mrb[0].mxu0
    %v2550 = vadd.f32 %v2509, %v2549
    %v2551 = vpop.f32.mrb[0].mxu0
    %v2552 = vadd.f32 %v2511, %v2551
    %v2553 = vpop.f32.mrb[0].mxu0
    %v2554 = vpop.f32.mrb[0].mxu0
    %2555 = vdwg.mxu0
    %2556 = vmatprep.subr.bf16.mxu0 %v1853
    %2557 = vmatpush1.bf16.msra.mxu0 %v1852
    %2558 = vmatprep.subr.bf16.mxu0 %v1861
    %2559 = vmatpush1.bf16.msra.mxu0 %v1860
    %2560 = vmatprep.subr.bf16.mxu0 %v1869
    %2561 = vmatpush1.bf16.msra.mxu0 %v1868
    %2562 = vmatprep.subr.bf16.mxu0 %v1877
    %2563 = vmatpush1.bf16.msra.mxu0 %v1876
    %2564 = vmatprep.subr.bf16.mxu0 %v1885
    %2565 = vmatpush1.bf16.msra.mxu0 %v1884
    %2566 = vmatprep.subr.bf16.mxu0 %v1893
    %2567 = vmatpush1.bf16.msra.mxu0 %v1892
    %2568 = vmatprep.subr.bf16.mxu0 %v1901
    %2569 = vmatpush1.bf16.msra.mxu0 %v1900
    %2570 = vmatprep.subr.bf16.mxu0 %v1909
    %2571 = vmatpush1.bf16.msra.mxu0 %v1908
    %2572 = vmatprep.subr.bf16.mxu0 %v1917
    %2573 = vmatpush1.bf16.msra.mxu0 %v1916
    %2574 = vmatprep.subr.bf16.mxu0 %v1925
    %2575 = vmatpush1.bf16.msra.mxu0 %v1924
    %2576 = vmatprep.subr.bf16.mxu0 %v1933
    %2577 = vmatpush1.bf16.msra.mxu0 %v1932
    %2578 = vmatprep.subr.bf16.mxu0 %v1941
    %2579 = vmatpush1.bf16.msra.mxu0 %v1940
    %2580 = vmatprep.subr.bf16.mxu0 %v1949
    %2581 = vmatpush1.bf16.msra.mxu0 %v1948
    %2582 = vmatprep.subr.bf16.mxu0 %v2337
    %2583 = vmatpush1.bf16.msra.mxu0 %v2334
    %2584 = vmatprep.subr.bf16.mxu0 0
    %2585 = vmatpush1.bf16.msra.mxu0 0
    %2586 = vmatprep.subr.bf16.mxu0 0
    %2587 = vmatpush1.bf16.msra.mxu0 0
    %2588 = vmatprep.mubr.bf16.mxu0 %v2324
    %2589 = vmatmul.mubr.bf16.gmra.mrb[0].mxu0 %v94
    %v2590 = vpop.f32.mrb[0].mxu0
    %v2591 = vadd.f32 %v2550, %v2590
    %v2592 = vpop.f32.mrb[0].mxu0
    %v2593 = vadd.f32 %v2552, %v2592
    %v2594 = vpop.f32.mrb[0].mxu0
    %v2595 = vpop.f32.mrb[0].mxu0
    %2596 = vdwg.mxu0
    %2597 = vmatprep.subr.bf16.mxu0 %v1599
    %2598 = vmatpush1.bf16.msra.mxu0 %v1598
    %2599 = vmatprep.subr.bf16.mxu0 %v1607
    %2600 = vmatpush1.bf16.msra.mxu0 %v1606
    %2601 = vmatprep.subr.bf16.mxu0 %v1615
    %2602 = vmatpush1.bf16.msra.mxu0 %v1614
    %2603 = vmatprep.subr.bf16.mxu0 %v1623
    %2604 = vmatpush1.bf16.msra.mxu0 %v1622
    %2605 = vmatprep.subr.bf16.mxu0 %v1631
    %2606 = vmatpush1.bf16.msra.mxu0 %v1630
    %2607 = vmatprep.subr.bf16.mxu0 %v1639
    %2608 = vmatpush1.bf16.msra.mxu0 %v1638
    %2609 = vmatprep.subr.bf16.mxu0 %v1647
    %2610 = vmatpush1.bf16.msra.mxu0 %v1646
    %2611 = vmatprep.subr.bf16.mxu0 %v1655
    %2612 = vmatpush1.bf16.msra.mxu0 %v1654
    %2613 = vmatprep.subr.bf16.mxu0 %v1663
    %2614 = vmatpush1.bf16.msra.mxu0 %v1662
    %2615 = vmatprep.subr.bf16.mxu0 %v1671
    %2616 = vmatpush1.bf16.msra.mxu0 %v1670
    %2617 = vmatprep.subr.bf16.mxu0 %v1679
    %2618 = vmatpush1.bf16.msra.mxu0 %v1678
    %2619 = vmatprep.subr.bf16.mxu0 %v1687
    %2620 = vmatpush1.bf16.msra.mxu0 %v1686
    %2621 = vmatprep.subr.bf16.mxu0 %v1695
    %2622 = vmatpush1.bf16.msra.mxu0 %v1694
    %2623 = vmatprep.subr.bf16.mxu0 %v1703
    %2624 = vmatpush1.bf16.msra.mxu0 %v1702
    %2625 = vmatprep.subr.bf16.mxu0 %v1711
    %2626 = vmatpush1.bf16.msra.mxu0 %v1710
    %2627 = vmatprep.subr.bf16.mxu0 %v1719
    %2628 = vmatpush1.bf16.msra.mxu0 %v1718
    %2629 = vmatprep.mubr.bf16.mxu0 %v91
    %2630 = vmatmul.mubr.bf16.gmra.mrb[0].mxu0 %v90
    %v2631 = vpop.f32.mrb[0].mxu0
    %v2632 = vadd.f32 %v481, %v2631
    %v2633 = vpop.f32.mrb[0].mxu0
    %v2634 = vadd.f32 %v485, %v2633
    %v2635 = vpop.f32.mrb[0].mxu0
    %v2636 = vpop.f32.mrb[0].mxu0
    %2637 = vdwg.mxu0
    %2638 = vmatprep.subr.bf16.mxu0 %v1727
    %2639 = vmatpush1.bf16.msra.mxu0 %v1726
    %2640 = vmatprep.subr.bf16.mxu0 %v1735
    %2641 = vmatpush1.bf16.msra.mxu0 %v1734
    %2642 = vmatprep.subr.bf16.mxu0 %v1743
    %2643 = vmatpush1.bf16.msra.mxu0 %v1742
    %2644 = vmatprep.subr.bf16.mxu0 %v1751
    %2645 = vmatpush1.bf16.msra.mxu0 %v1750
    %2646 = vmatprep.subr.bf16.mxu0 %v1759
    %2647 = vmatpush1.bf16.msra.mxu0 %v1758
    %2648 = vmatprep.subr.bf16.mxu0 %v1767
    %2649 = vmatpush1.bf16.msra.mxu0 %v1766
    %2650 = vmatprep.subr.bf16.mxu0 %v1775
    %2651 = vmatpush1.bf16.msra.mxu0 %v1774
    %2652 = vmatprep.subr.bf16.mxu0 %v1783
    %2653 = vmatpush1.bf16.msra.mxu0 %v1782
    %2654 = vmatprep.subr.bf16.mxu0 %v1791
    %2655 = vmatpush1.bf16.msra.mxu0 %v1790
    %2656 = vmatprep.subr.bf16.mxu0 %v1799
    %2657 = vmatpush1.bf16.msra.mxu0 %v1798
    %2658 = vmatprep.subr.bf16.mxu0 %v1807
    %2659 = vmatpush1.bf16.msra.mxu0 %v1806
    %2660 = vmatprep.subr.bf16.mxu0 %v1815
    %2661 = vmatpush1.bf16.msra.mxu0 %v1814
    %2662 = vmatprep.subr.bf16.mxu0 %v1823
    %2663 = vmatpush1.bf16.msra.mxu0 %v1822
    %2664 = vmatprep.subr.bf16.mxu0 %v1831
    %2665 = vmatpush1.bf16.msra.mxu0 %v1830
    %2666 = vmatprep.subr.bf16.mxu0 %v1839
    %2667 = vmatpush1.bf16.msra.mxu0 %v1838
    %2668 = vmatprep.subr.bf16.mxu0 %v1847
    %2669 = vmatpush1.bf16.msra.mxu0 %v1846
    %2670 = vmatprep.mubr.bf16.mxu0 %v93
    %2671 = vmatmul.mubr.bf16.gmra.mrb[0].mxu0 %v92
    %v2672 = vpop.f32.mrb[0].mxu0
    %v2673 = vadd.f32 %v2632, %v2672
    %v2674 = vpop.f32.mrb[0].mxu0
    %v2675 = vadd.f32 %v2634, %v2674
    %v2676 = vpop.f32.mrb[0].mxu0
    %v2677 = vpop.f32.mrb[0].mxu0
    %2678 = vdwg.mxu0
    %2679 = vmatprep.subr.bf16.mxu0 %v1855
    %2680 = vmatpush1.bf16.msra.mxu0 %v1854
    %2681 = vmatprep.subr.bf16.mxu0 %v1863
    %2682 = vmatpush1.bf16.msra.mxu0 %v1862
    %2683 = vmatprep.subr.bf16.mxu0 %v1871
    %2684 = vmatpush1.bf16.msra.mxu0 %v1870
    %2685 = vmatprep.subr.bf16.mxu0 %v1879
    %2686 = vmatpush1.bf16.msra.mxu0 %v1878
    %2687 = vmatprep.subr.bf16.mxu0 %v1887
    %2688 = vmatpush1.bf16.msra.mxu0 %v1886
    %2689 = vmatprep.subr.bf16.mxu0 %v1895
    %2690 = vmatpush1.bf16.msra.mxu0 %v1894
    %2691 = vmatprep.subr.bf16.mxu0 %v1903
    %2692 = vmatpush1.bf16.msra.mxu0 %v1902
    %2693 = vmatprep.subr.bf16.mxu0 %v1911
    %2694 = vmatpush1.bf16.msra.mxu0 %v1910
    %2695 = vmatprep.subr.bf16.mxu0 %v1919
    %2696 = vmatpush1.bf16.msra.mxu0 %v1918
    %2697 = vmatprep.subr.bf16.mxu0 %v1927
    %2698 = vmatpush1.bf16.msra.mxu0 %v1926
    %2699 = vmatprep.subr.bf16.mxu0 %v1935
    %2700 = vmatpush1.bf16.msra.mxu0 %v1934
    %2701 = vmatprep.subr.bf16.mxu0 %v1943
    %2702 = vmatpush1.bf16.msra.mxu0 %v1942
    %2703 = vmatprep.subr.bf16.mxu0 %v1951
    %2704 = vmatpush1.bf16.msra.mxu0 %v1950
    %2705 = vmatprep.subr.bf16.mxu0 %v2343
    %2706 = vmatpush1.bf16.msra.mxu0 %v2340
    %2707 = vmatprep.subr.bf16.mxu0 0
    %2708 = vmatpush1.bf16.msra.mxu0 0
    %2709 = vmatprep.subr.bf16.mxu0 0
    %2710 = vmatpush1.bf16.msra.mxu0 0
    %2711 = vmatprep.mubr.bf16.mxu0 %v2324
    %2712 = vmatmul.mubr.bf16.gmra.mrb[0].mxu0 %v94
    %v2713 = vpop.f32.mrb[0].mxu0
    %v2714 = vadd.f32 %v2673, %v2713
    %v2715 = vpop.f32.mrb[0].mxu0
    %v2716 = vadd.f32 %v2675, %v2715
    %v2717 = vpop.f32.mrb[0].mxu0
    %v2718 = vpop.f32.mrb[0].mxu0
    %2719 = vdwg.mxu0
    %2720 = vmatprep.subr.bf16.mxu0 %v1601
    %2721 = vmatpush1.bf16.msra.mxu0 %v1600
    %2722 = vmatprep.subr.bf16.mxu0 %v1609
    %2723 = vmatpush1.bf16.msra.mxu0 %v1608
    %2724 = vmatprep.subr.bf16.mxu0 %v1617
    %2725 = vmatpush1.bf16.msra.mxu0 %v1616
    %2726 = vmatprep.subr.bf16.mxu0 %v1625
    %2727 = vmatpush1.bf16.msra.mxu0 %v1624
    %2728 = vmatprep.subr.bf16.mxu0 %v1633
    %2729 = vmatpush1.bf16.msra.mxu0 %v1632
    %2730 = vmatprep.subr.bf16.mxu0 %v1641
    %2731 = vmatpush1.bf16.msra.mxu0 %v1640
    %2732 = vmatprep.subr.bf16.mxu0 %v1649
    %2733 = vmatpush1.bf16.msra.mxu0 %v1648
    %2734 = vmatprep.subr.bf16.mxu0 %v1657
    %2735 = vmatpush1.bf16.msra.mxu0 %v1656
    %2736 = vmatprep.subr.bf16.mxu0 %v1665
    %2737 = vmatpush1.bf16.msra.mxu0 %v1664
    %2738 = vmatprep.subr.bf16.mxu0 %v1673
    %2739 = vmatpush1.bf16.msra.mxu0 %v1672
    %2740 = vmatprep.subr.bf16.mxu0 %v1681
    %2741 = vmatpush1.bf16.msra.mxu0 %v1680
    %2742 = vmatprep.subr.bf16.mxu0 %v1689
    %2743 = vmatpush1.bf16.msra.mxu0 %v1688
    %2744 = vmatprep.subr.bf16.mxu0 %v1697
    %2745 = vmatpush1.bf16.msra.mxu0 %v1696
    %2746 = vmatprep.subr.bf16.mxu0 %v1705
    %2747 = vmatpush1.bf16.msra.mxu0 %v1704
    %2748 = vmatprep.subr.bf16.mxu0 %v1713
    %2749 = vmatpush1.bf16.msra.mxu0 %v1712
    %2750 = vmatprep.subr.bf16.mxu0 %v1721
    %2751 = vmatpush1.bf16.msra.mxu0 %v1720
    %2752 = vmatprep.mubr.bf16.mxu0 %v91
    %2753 = vmatmul.mubr.bf16.gmra.mrb[0].mxu0 %v90
    %v2754 = vpop.f32.mrb[0].mxu0
    %v2755 = vadd.f32 %v489, %v2754
    %v2756 = vpop.f32.mrb[0].mxu0
    %v2757 = vadd.f32 %v493, %v2756
    %v2758 = vpop.f32.mrb[0].mxu0
    %v2759 = vpop.f32.mrb[0].mxu0
    %2760 = vdwg.mxu0
    %2761 = vmatprep.subr.bf16.mxu0 %v1729
    %2762 = vmatpush1.bf16.msra.mxu0 %v1728
    %2763 = vmatprep.subr.bf16.mxu0 %v1737
    %2764 = vmatpush1.bf16.msra.mxu0 %v1736
    %2765 = vmatprep.subr.bf16.mxu0 %v1745
    %2766 = vmatpush1.bf16.msra.mxu0 %v1744
    %2767 = vmatprep.subr.bf16.mxu0 %v1753
    %2768 = vmatpush1.bf16.msra.mxu0 %v1752
    %2769 = vmatprep.subr.bf16.mxu0 %v1761
    %2770 = vmatpush1.bf16.msra.mxu0 %v1760
    %2771 = vmatprep.subr.bf16.mxu0 %v1769
    %2772 = vmatpush1.bf16.msra.mxu0 %v1768
    %2773 = vmatprep.subr.bf16.mxu0 %v1777
    %2774 = vmatpush1.bf16.msra.mxu0 %v1776
    %2775 = vmatprep.subr.bf16.mxu0 %v1785
    %2776 = vmatpush1.bf16.msra.mxu0 %v1784
    %2777 = vmatprep.subr.bf16.mxu0 %v1793
    %2778 = vmatpush1.bf16.msra.mxu0 %v1792
    %2779 = vmatprep.subr.bf16.mxu0 %v1801
    %2780 = vmatpush1.bf16.msra.mxu0 %v1800
    %2781 = vmatprep.subr.bf16.mxu0 %v1809
    %2782 = vmatpush1.bf16.msra.mxu0 %v1808
    %2783 = vmatprep.subr.bf16.mxu0 %v1817
    %2784 = vmatpush1.bf16.msra.mxu0 %v1816
    %2785 = vmatprep.subr.bf16.mxu0 %v1825
    %2786 = vmatpush1.bf16.msra.mxu0 %v1824
    %2787 = vmatprep.subr.bf16.mxu0 %v1833
    %2788 = vmatpush1.bf16.msra.mxu0 %v1832
    %2789 = vmatprep.subr.bf16.mxu0 %v1841
    %2790 = vmatpush1.bf16.msra.mxu0 %v1840
    %2791 = vmatprep.subr.bf16.mxu0 %v1849
    %2792 = vmatpush1.bf16.msra.mxu0 %v1848
    %2793 = vmatprep.mubr.bf16.mxu0 %v93
    %2794 = vmatmul.mubr.bf16.gmra.mrb[0].mxu0 %v92
    %v2795 = vpop.f32.mrb[0].mxu0
    %v2796 = vadd.f32 %v2755, %v2795
    %v2797 = vpop.f32.mrb[0].mxu0
    %v2798 = vadd.f32 %v2757, %v2797
    %v2799 = vpop.f32.mrb[0].mxu0
    %v2800 = vpop.f32.mrb[0].mxu0
    %2801 = vdwg.mxu0
    %2802 = vmatprep.subr.bf16.mxu0 %v1857
    %2803 = vmatpush1.bf16.msra.mxu0 %v1856
    %2804 = vmatprep.subr.bf16.mxu0 %v1865
    %2805 = vmatpush1.bf16.msra.mxu0 %v1864
    %2806 = vmatprep.subr.bf16.mxu0 %v1873
    %2807 = vmatpush1.bf16.msra.mxu0 %v1872
    %2808 = vmatprep.subr.bf16.mxu0 %v1881
    %2809 = vmatpush1.bf16.msra.mxu0 %v1880
    %2810 = vmatprep.subr.bf16.mxu0 %v1889
    %2811 = vmatpush1.bf16.msra.mxu0 %v1888
    %2812 = vmatprep.subr.bf16.mxu0 %v1897
    %2813 = vmatpush1.bf16.msra.mxu0 %v1896
    %2814 = vmatprep.subr.bf16.mxu0 %v1905
    %2815 = vmatpush1.bf16.msra.mxu0 %v1904
    %2816 = vmatprep.subr.bf16.mxu0 %v1913
    %2817 = vmatpush1.bf16.msra.mxu0 %v1912
    %2818 = vmatprep.subr.bf16.mxu0 %v1921
    %2819 = vmatpush1.bf16.msra.mxu0 %v1920
    %2820 = vmatprep.subr.bf16.mxu0 %v1929
    %2821 = vmatpush1.bf16.msra.mxu0 %v1928
    %2822 = vmatprep.subr.bf16.mxu0 %v1937
    %2823 = vmatpush1.bf16.msra.mxu0 %v1936
    %2824 = vmatprep.subr.bf16.mxu0 %v1945
    %2825 = vmatpush1.bf16.msra.mxu0 %v1944
    %2826 = vmatprep.subr.bf16.mxu0 %v1953
    %2827 = vmatpush1.bf16.msra.mxu0 %v1952
    %2828 = vmatprep.subr.bf16.mxu0 %v2349
    %2829 = vmatpush1.bf16.msra.mxu0 %v2346
    %2830 = vmatprep.subr.bf16.mxu0 0
    %2831 = vmatpush1.bf16.msra.mxu0 0
    %2832 = vmatprep.subr.bf16.mxu0 0
    %2833 = vmatpush1.bf16.msra.mxu0 0
    %2834 = vmatprep.mubr.bf16.mxu0 %v2324
    %2835 = vmatmul.mubr.bf16.gmra.mrb[0].mxu0 %v94
    %v2836 = vpop.f32.mrb[0].mxu0
    %v2837 = vadd.f32 %v2796, %v2836
    %v2838 = vpop.f32.mrb[0].mxu0
    %v2839 = vadd.f32 %v2798, %v2838
    %v2840 = vpop.f32.mrb[0].mxu0
    %v2841 = vpop.f32.mrb[0].mxu0
    %2842 = vdwg.mxu0
    %v2843 = vmax.f32 %v2468, 0.0
    %v2844 = vmax.f32 %v2470, 0.0
    %v2845 = vmax.f32 %v2591, 0.0
    %v2846 = vmax.f32 %v2593, 0.0
    %v2847 = vmax.f32 %v2714, 0.0
    %v2848 = vmax.f32 %v2716, 0.0
    %v2849 = vmax.f32 %v2837, 0.0
    %v2850 = vmax.f32 %v2839, 0.0
    %v2851 = vpack.c.bf16 %v2843, %v2843
    %v2852 = vpack.c.bf16 %v2844, %v2844
    %v2853 = vpack.c.bf16 %v2845, %v2845
    %v2854 = vpack.c.bf16 %v2846, %v2846
    %v2855 = vpack.c.bf16 %v2847, %v2847
    %v2856 = vpack.c.bf16 %v2848, %v2848
    %v2857 = vpack.c.bf16 %v2849, %v2849
    %v2858 = vpack.c.bf16 %v2850, %v2850
    %v2859 = vld [vmem:[#allocation8] sm:$0xff]
    %v2860 = vld [vmem:[#allocation8 + $0x8] sm:$0xff]
    %v2861 = vld [vmem:[#allocation8 + $0x10] sm:$0xff]
    %v2862 = vld [vmem:[#allocation8 + $0x18] sm:$0xff]
    %v2863 = vld [vmem:[#allocation8 + $0x20] sm:$0xff]
    %v2864 = vld [vmem:[#allocation8 + $0x28] sm:$0xff]
    %v2865 = vld [vmem:[#allocation8 + $0x30] sm:$0xff]
    %v2866 = vld [vmem:[#allocation8 + $0x38] sm:$0xff]
    %v2867 = vld [vmem:[#allocation8 + $0x40] sm:$0xff]
    %v2868 = vld [vmem:[#allocation8 + $0x48] sm:$0xff]
    %v2869 = vld [vmem:[#allocation8 + $0x50] sm:$0xff]
    %v2870 = vld [vmem:[#allocation8 + $0x58] sm:$0xff]
    %v2871 = vld [vmem:[#allocation8 + $0x60] sm:$0xff]
    %v2872 = vld [vmem:[#allocation8 + $0x68] sm:$0xff]
    %v2873 = vld [vmem:[#allocation8 + $0x70] sm:$0xff]
    %v2874 = vld [vmem:[#allocation8 + $0x78] sm:$0xff]
    %v2875 = vld [vmem:[#allocation8 + $0x80] sm:$0xff]
    %v2876 = vld [vmem:[#allocation8 + $0x88] sm:$0xff]
    %v2877 = vld [vmem:[#allocation8 + $0x90] sm:$0xff]
    %v2878 = vld [vmem:[#allocation8 + $0x98] sm:$0xff]
    %v2879 = vld [vmem:[#allocation8 + $0xa0] sm:$0xff]
    %v2880 = vld [vmem:[#allocation8 + $0xa8] sm:$0xff]
    %v2881 = vld [vmem:[#allocation8 + $0xb0] sm:$0xff]
    %v2882 = vld [vmem:[#allocation8 + $0xb8] sm:$0xff]
    %v2883 = vld [vmem:[#allocation8 + $0xc0] sm:$0xff]
    %v2884 = vld [vmem:[#allocation8 + $0xc8] sm:$0xff]
    %v2885 = vld [vmem:[#allocation8 + $0xd0] sm:$0xff]
    %v2886 = vld [vmem:[#allocation8 + $0xd8] sm:$0xff]
    %v2887 = vld [vmem:[#allocation8 + $0xe0] sm:$0xff]
    %v2888 = vld [vmem:[#allocation8 + $0xe8] sm:$0xff]
    %v2889 = vld [vmem:[#allocation8 + $0xf0] sm:$0xff]
    %v2890 = vld [vmem:[#allocation8 + $0xf8] sm:$0xff]
    %v2891 = vld [vmem:[#allocation8 + $0x100] sm:$0xff]
    %v2892 = vld [vmem:[#allocation8 + $0x108] sm:$0xff]
    %v2893 = vld [vmem:[#allocation8 + $0x110] sm:$0xff]
    %v2894 = vld [vmem:[#allocation8 + $0x118] sm:$0xff]
    %v2895 = vld [vmem:[#allocation8 + $0x120] sm:$0xff]
    %v2896 = vld [vmem:[#allocation8 + $0x128] sm:$0xff]
    %v2897 = vld [vmem:[#allocation8 + $0x130] sm:$0xff]
    %v2898 = vld [vmem:[#allocation8 + $0x138] sm:$0xff]
    %v2899 = vld [vmem:[#allocation8 + $0x140] sm:$0xff]
    %v2900 = vld [vmem:[#allocation8 + $0x148] sm:$0xff]
    %v2901 = vld [vmem:[#allocation8 + $0x150] sm:$0xff]
    %v2902 = vld [vmem:[#allocation8 + $0x158] sm:$0xff]
    %v2903 = vld [vmem:[#allocation8 + $0x160] sm:$0xff]
    %v2904 = vld [vmem:[#allocation8 + $0x168] sm:$0xff]
    %v2905 = vld [vmem:[#allocation8 + $0x170] sm:$0xff]
    %v2906 = vld [vmem:[#allocation8 + $0x178] sm:$0xff]
    %v2907 = vld [vmem:[#allocation8 + $0x180] sm:$0xff]
    %v2908 = vld [vmem:[#allocation8 + $0x188] sm:$0xff]
    %v2909 = vld [vmem:[#allocation8 + $0x190] sm:$0xff]
    %v2910 = vld [vmem:[#allocation8 + $0x198] sm:$0xff]
    %v2911 = vld [vmem:[#allocation8 + $0x1a0] sm:$0xff]
    %v2912 = vld [vmem:[#allocation8 + $0x1a8] sm:$0xff]
    %v2913 = vld [vmem:[#allocation8 + $0x1b0] sm:$0xff]
    %v2914 = vld [vmem:[#allocation8 + $0x1b8] sm:$0xff]
    %v2915 = vld [vmem:[#allocation8 + $0x1c0] sm:$0xff]
    %v2916 = vld [vmem:[#allocation8 + $0x1c8] sm:$0xff]
    %v2917 = vld [vmem:[#allocation8 + $0x1d0] sm:$0xff]
    %v2918 = vld [vmem:[#allocation8 + $0x1d8] sm:$0xff]
    %v2919 = vld [vmem:[#allocation8 + $0x1e0] sm:$0xff]
    %v2920 = vld [vmem:[#allocation8 + $0x1e8] sm:$0xff]
    %v2921 = vld [vmem:[#allocation8 + $0x1f0] sm:$0xff]
    %v2922 = vld [vmem:[#allocation8 + $0x1f8] sm:$0xff]
    %v2923 = vld [vmem:[#allocation8 + $0x200] sm:$0xff]
    %v2924 = vld [vmem:[#allocation8 + $0x208] sm:$0xff]
    %v2925 = vld [vmem:[#allocation8 + $0x210] sm:$0xff]
    %v2926 = vld [vmem:[#allocation8 + $0x218] sm:$0xff]
    %v2927 = vld [vmem:[#allocation8 + $0x220] sm:$0xff]
    %v2928 = vld [vmem:[#allocation8 + $0x228] sm:$0xff]
    %v2929 = vld [vmem:[#allocation8 + $0x230] sm:$0xff]
    %v2930 = vld [vmem:[#allocation8 + $0x238] sm:$0xff]
    %v2931 = vld [vmem:[#allocation8 + $0x240] sm:$0xff]
    %v2932 = vld [vmem:[#allocation8 + $0x248] sm:$0xff]
    %v2933 = vld [vmem:[#allocation8 + $0x250] sm:$0xff]
    %v2934 = vld [vmem:[#allocation8 + $0x258] sm:$0xff]
    %v2935 = vld [vmem:[#allocation8 + $0x260] sm:$0xff]
    %v2936 = vld [vmem:[#allocation8 + $0x268] sm:$0xff]
    %v2937 = vld [vmem:[#allocation8 + $0x270] sm:$0xff]
    %v2938 = vld [vmem:[#allocation8 + $0x278] sm:$0xff]
    %v2939 = vld [vmem:[#allocation8 + $0x280] sm:$0xff]
    %v2940 = vld [vmem:[#allocation8 + $0x288] sm:$0xff]
    %v2941 = vld [vmem:[#allocation8 + $0x290] sm:$0xff]
    %v2942 = vld [vmem:[#allocation8 + $0x298] sm:$0xff]
    %v2943 = vld [vmem:[#allocation8 + $0x2a0] sm:$0xff]
    %v2944 = vld [vmem:[#allocation8 + $0x2a8] sm:$0xff]
    %v2945 = vld [vmem:[#allocation8 + $0x2b0] sm:$0xff]
    %v2946 = vld [vmem:[#allocation8 + $0x2b8] sm:$0xff]
    %v2947 = vld [vmem:[#allocation8 + $0x2c0] sm:$0xff]
    %v2948 = vld [vmem:[#allocation8 + $0x2c8] sm:$0xff]
    %v2949 = vld [vmem:[#allocation8 + $0x2d0] sm:$0xff]
    %v2950 = vld [vmem:[#allocation8 + $0x2d8] sm:$0xff]
    %v2951 = vld [vmem:[#allocation8 + $0x2e0] sm:$0xff]
    %v2952 = vld [vmem:[#allocation8 + $0x2e8] sm:$0xff]
    %v2953 = vld [vmem:[#allocation8 + $0x2f0] sm:$0xff]
    %v2954 = vld [vmem:[#allocation8 + $0x2f8] sm:$0xff]
    %v2955 = vld [vmem:[#allocation8 + $0x300] sm:$0xff]
    %v2956 = vld [vmem:[#allocation8 + $0x308] sm:$0xff]
    %v2957 = vld [vmem:[#allocation8 + $0x310] sm:$0xff]
    %v2958 = vld [vmem:[#allocation8 + $0x318] sm:$0xff]
    %v2959 = vld [vmem:[#allocation8 + $0x320] sm:$0xff]
    %v2960 = vld [vmem:[#allocation8 + $0x328] sm:$0xff]
    %v2961 = vld [vmem:[#allocation8 + $0x330] sm:$0xff]
    %v2962 = vld [vmem:[#allocation8 + $0x338] sm:$0xff]
    %v2963 = vld [vmem:[#allocation8 + $0x340] sm:$0xff]
    %v2964 = vld [vmem:[#allocation8 + $0x348] sm:$0xff]
    %v2965 = vld [vmem:[#allocation8 + $0x350] sm:$0xff]
    %v2966 = vld [vmem:[#allocation8 + $0x358] sm:$0xff]
    %v2967 = vld [vmem:[#allocation8 + $0x360] sm:$0xff]
    %v2968 = vld [vmem:[#allocation8 + $0x368] sm:$0xff]
    %v2969 = vld [vmem:[#allocation8 + $0x370] sm:$0xff]
    %v2970 = vld [vmem:[#allocation8 + $0x378] sm:$0xff]
    %v2971 = vld [vmem:[#allocation8 + $0x380] sm:$0xff]
    %v2972 = vld [vmem:[#allocation8 + $0x388] sm:$0xff]
    %v2973 = vld [vmem:[#allocation8 + $0x390] sm:$0xff]
    %v2974 = vld [vmem:[#allocation8 + $0x398] sm:$0xff]
    %v2975 = vld [vmem:[#allocation8 + $0x3a0] sm:$0xff]
    %v2976 = vld [vmem:[#allocation8 + $0x3a8] sm:$0xff]
    %v2977 = vld [vmem:[#allocation8 + $0x3b0] sm:$0xff]
    %v2978 = vld [vmem:[#allocation8 + $0x3b8] sm:$0xff]
    %v2979 = vld [vmem:[#allocation8 + $0x3c0] sm:$0xff]
    %v2980 = vld [vmem:[#allocation8 + $0x3c8] sm:$0xff]
    %v2981 = vld [vmem:[#allocation8 + $0x3d0] sm:$0xff]
    %v2982 = vld [vmem:[#allocation8 + $0x3d8] sm:$0xff]
    %v2983 = vld [vmem:[#allocation8 + $0x3e0] sm:$0xff]
    %v2984 = vld [vmem:[#allocation8 + $0x3e8] sm:$0xff]
    %v2985 = vld [vmem:[#allocation8 + $0x3f0] sm:$0xff]
    %v2986 = vld [vmem:[#allocation8 + $0x3f8] sm:$0xff]
    %v2987 = vld [vmem:[#allocation10] sm:$0x3]
    %v2989 = vlaneseq
    %v2990 = vshrl.u32 %v2989, 7
    %v2991 = vsub.s32 0, %v2990
    %v2992 = vrot.slane %v2987, %v2991
    %v2993 = vlaneseq
    %v2994 = vshrl.u32 %v2993, 7
    %v2995 = vsub.s32 1, %v2994
    %v2996 = vrot.slane %v2987, %v2995
    %v3127 = vunpack.c.l.b16 %v2859
    %v3128 = vunpack.c.h.b16 %v2859
    %v3129 = vunpack.c.l.b16 %v2860
    %v3130 = vunpack.c.h.b16 %v2860
    %v3131 = vunpack.c.l.b16 %v2861
    %v3132 = vunpack.c.h.b16 %v2861
    %v3133 = vunpack.c.l.b16 %v2862
    %v3134 = vunpack.c.h.b16 %v2862
    %v3135 = vunpack.c.l.b16 %v2863
    %v3136 = vunpack.c.h.b16 %v2863
    %v3137 = vunpack.c.l.b16 %v2864
    %v3138 = vunpack.c.h.b16 %v2864
    %v3139 = vunpack.c.l.b16 %v2865
    %v3140 = vunpack.c.h.b16 %v2865
    %v3141 = vunpack.c.l.b16 %v2866
    %v3142 = vunpack.c.h.b16 %v2866
    %v3143 = vunpack.c.l.b16 %v2867
    %v3144 = vunpack.c.h.b16 %v2867
    %v3145 = vunpack.c.l.b16 %v2868
    %v3146 = vunpack.c.h.b16 %v2868
    %v3147 = vunpack.c.l.b16 %v2869
    %v3148 = vunpack.c.h.b16 %v2869
    %v3149 = vunpack.c.l.b16 %v2870
    %v3150 = vunpack.c.h.b16 %v2870
    %v3151 = vunpack.c.l.b16 %v2871
    %v3152 = vunpack.c.h.b16 %v2871
    %v3153 = vunpack.c.l.b16 %v2872
    %v3154 = vunpack.c.h.b16 %v2872
    %v3155 = vunpack.c.l.b16 %v2873
    %v3156 = vunpack.c.h.b16 %v2873
    %v3157 = vunpack.c.l.b16 %v2874
    %v3158 = vunpack.c.h.b16 %v2874
    %v3159 = vunpack.c.l.b16 %v2875
    %v3160 = vunpack.c.h.b16 %v2875
    %v3161 = vunpack.c.l.b16 %v2876
    %v3162 = vunpack.c.h.b16 %v2876
    %v3163 = vunpack.c.l.b16 %v2877
    %v3164 = vunpack.c.h.b16 %v2877
    %v3165 = vunpack.c.l.b16 %v2878
    %v3166 = vunpack.c.h.b16 %v2878
    %v3167 = vunpack.c.l.b16 %v2879
    %v3168 = vunpack.c.h.b16 %v2879
    %v3169 = vunpack.c.l.b16 %v2880
    %v3170 = vunpack.c.h.b16 %v2880
    %v3171 = vunpack.c.l.b16 %v2881
    %v3172 = vunpack.c.h.b16 %v2881
    %v3173 = vunpack.c.l.b16 %v2882
    %v3174 = vunpack.c.h.b16 %v2882
    %v3175 = vunpack.c.l.b16 %v2883
    %v3176 = vunpack.c.h.b16 %v2883
    %v3177 = vunpack.c.l.b16 %v2884
    %v3178 = vunpack.c.h.b16 %v2884
    %v3179 = vunpack.c.l.b16 %v2885
    %v3180 = vunpack.c.h.b16 %v2885
    %v3181 = vunpack.c.l.b16 %v2886
    %v3182 = vunpack.c.h.b16 %v2886
    %v3183 = vunpack.c.l.b16 %v2887
    %v3184 = vunpack.c.h.b16 %v2887
    %v3185 = vunpack.c.l.b16 %v2888
    %v3186 = vunpack.c.h.b16 %v2888
    %v3187 = vunpack.c.l.b16 %v2889
    %v3188 = vunpack.c.h.b16 %v2889
    %v3189 = vunpack.c.l.b16 %v2890
    %v3190 = vunpack.c.h.b16 %v2890
    %v3191 = vunpack.c.l.b16 %v2891
    %v3192 = vunpack.c.h.b16 %v2891
    %v3193 = vunpack.c.l.b16 %v2892
    %v3194 = vunpack.c.h.b16 %v2892
    %v3195 = vunpack.c.l.b16 %v2893
    %v3196 = vunpack.c.h.b16 %v2893
    %v3197 = vunpack.c.l.b16 %v2894
    %v3198 = vunpack.c.h.b16 %v2894
    %v3199 = vunpack.c.l.b16 %v2895
    %v3200 = vunpack.c.h.b16 %v2895
    %v3201 = vunpack.c.l.b16 %v2896
    %v3202 = vunpack.c.h.b16 %v2896
    %v3203 = vunpack.c.l.b16 %v2897
    %v3204 = vunpack.c.h.b16 %v2897
    %v3205 = vunpack.c.l.b16 %v2898
    %v3206 = vunpack.c.h.b16 %v2898
    %v3207 = vunpack.c.l.b16 %v2899
    %v3208 = vunpack.c.h.b16 %v2899
    %v3209 = vunpack.c.l.b16 %v2900
    %v3210 = vunpack.c.h.b16 %v2900
    %v3211 = vunpack.c.l.b16 %v2901
    %v3212 = vunpack.c.h.b16 %v2901
    %v3213 = vunpack.c.l.b16 %v2902
    %v3214 = vunpack.c.h.b16 %v2902
    %v3215 = vunpack.c.l.b16 %v2903
    %v3216 = vunpack.c.h.b16 %v2903
    %v3217 = vunpack.c.l.b16 %v2904
    %v3218 = vunpack.c.h.b16 %v2904
    %v3219 = vunpack.c.l.b16 %v2905
    %v3220 = vunpack.c.h.b16 %v2905
    %v3221 = vunpack.c.l.b16 %v2906
    %v3222 = vunpack.c.h.b16 %v2906
    %v3223 = vunpack.c.l.b16 %v2907
    %v3224 = vunpack.c.h.b16 %v2907
    %v3225 = vunpack.c.l.b16 %v2908
    %v3226 = vunpack.c.h.b16 %v2908
    %v3227 = vunpack.c.l.b16 %v2909
    %v3228 = vunpack.c.h.b16 %v2909
    %v3229 = vunpack.c.l.b16 %v2910
    %v3230 = vunpack.c.h.b16 %v2910
    %v3231 = vunpack.c.l.b16 %v2911
    %v3232 = vunpack.c.h.b16 %v2911
    %v3233 = vunpack.c.l.b16 %v2912
    %v3234 = vunpack.c.h.b16 %v2912
    %v3235 = vunpack.c.l.b16 %v2913
    %v3236 = vunpack.c.h.b16 %v2913
    %v3237 = vunpack.c.l.b16 %v2914
    %v3238 = vunpack.c.h.b16 %v2914
    %v3239 = vunpack.c.l.b16 %v2915
    %v3240 = vunpack.c.h.b16 %v2915
    %v3241 = vunpack.c.l.b16 %v2916
    %v3242 = vunpack.c.h.b16 %v2916
    %v3243 = vunpack.c.l.b16 %v2917
    %v3244 = vunpack.c.h.b16 %v2917
    %v3245 = vunpack.c.l.b16 %v2918
    %v3246 = vunpack.c.h.b16 %v2918
    %v3247 = vunpack.c.l.b16 %v2919
    %v3248 = vunpack.c.h.b16 %v2919
    %v3249 = vunpack.c.l.b16 %v2920
    %v3250 = vunpack.c.h.b16 %v2920
    %v3251 = vunpack.c.l.b16 %v2921
    %v3252 = vunpack.c.h.b16 %v2921
    %v3253 = vunpack.c.l.b16 %v2922
    %v3254 = vunpack.c.h.b16 %v2922
    %v3255 = vunpack.c.l.b16 %v2923
    %v3256 = vunpack.c.h.b16 %v2923
    %v3257 = vunpack.c.l.b16 %v2924
    %v3258 = vunpack.c.h.b16 %v2924
    %v3259 = vunpack.c.l.b16 %v2925
    %v3260 = vunpack.c.h.b16 %v2925
    %v3261 = vunpack.c.l.b16 %v2926
    %v3262 = vunpack.c.h.b16 %v2926
    %v3263 = vunpack.c.l.b16 %v2927
    %v3264 = vunpack.c.h.b16 %v2927
    %v3265 = vunpack.c.l.b16 %v2928
    %v3266 = vunpack.c.h.b16 %v2928
    %v3267 = vunpack.c.l.b16 %v2929
    %v3268 = vunpack.c.h.b16 %v2929
    %v3269 = vunpack.c.l.b16 %v2930
    %v3270 = vunpack.c.h.b16 %v2930
    %v3271 = vunpack.c.l.b16 %v2931
    %v3272 = vunpack.c.h.b16 %v2931
    %v3273 = vunpack.c.l.b16 %v2932
    %v3274 = vunpack.c.h.b16 %v2932
    %v3275 = vunpack.c.l.b16 %v2933
    %v3276 = vunpack.c.h.b16 %v2933
    %v3277 = vunpack.c.l.b16 %v2934
    %v3278 = vunpack.c.h.b16 %v2934
    %v3279 = vunpack.c.l.b16 %v2935
    %v3280 = vunpack.c.h.b16 %v2935
    %v3281 = vunpack.c.l.b16 %v2936
    %v3282 = vunpack.c.h.b16 %v2936
    %v3283 = vunpack.c.l.b16 %v2937
    %v3284 = vunpack.c.h.b16 %v2937
    %v3285 = vunpack.c.l.b16 %v2938
    %v3286 = vunpack.c.h.b16 %v2938
    %v3287 = vunpack.c.l.b16 %v2939
    %v3288 = vunpack.c.h.b16 %v2939
    %v3289 = vunpack.c.l.b16 %v2940
    %v3290 = vunpack.c.h.b16 %v2940
    %v3291 = vunpack.c.l.b16 %v2941
    %v3292 = vunpack.c.h.b16 %v2941
    %v3293 = vunpack.c.l.b16 %v2942
    %v3294 = vunpack.c.h.b16 %v2942
    %v3295 = vunpack.c.l.b16 %v2943
    %v3296 = vunpack.c.h.b16 %v2943
    %v3297 = vunpack.c.l.b16 %v2944
    %v3298 = vunpack.c.h.b16 %v2944
    %v3299 = vunpack.c.l.b16 %v2945
    %v3300 = vunpack.c.h.b16 %v2945
    %v3301 = vunpack.c.l.b16 %v2946
    %v3302 = vunpack.c.h.b16 %v2946
    %v3303 = vunpack.c.l.b16 %v2947
    %v3304 = vunpack.c.h.b16 %v2947
    %v3305 = vunpack.c.l.b16 %v2948
    %v3306 = vunpack.c.h.b16 %v2948
    %v3307 = vunpack.c.l.b16 %v2949
    %v3308 = vunpack.c.h.b16 %v2949
    %v3309 = vunpack.c.l.b16 %v2950
    %v3310 = vunpack.c.h.b16 %v2950
    %v3311 = vunpack.c.l.b16 %v2951
    %v3312 = vunpack.c.h.b16 %v2951
    %v3313 = vunpack.c.l.b16 %v2952
    %v3314 = vunpack.c.h.b16 %v2952
    %v3315 = vunpack.c.l.b16 %v2953
    %v3316 = vunpack.c.h.b16 %v2953
    %v3317 = vunpack.c.l.b16 %v2954
    %v3318 = vunpack.c.h.b16 %v2954
    %v3319 = vunpack.c.l.b16 %v2955
    %v3320 = vunpack.c.h.b16 %v2955
    %v3321 = vunpack.c.l.b16 %v2956
    %v3322 = vunpack.c.h.b16 %v2956
    %v3323 = vunpack.c.l.b16 %v2957
    %v3324 = vunpack.c.h.b16 %v2957
    %v3325 = vunpack.c.l.b16 %v2958
    %v3326 = vunpack.c.h.b16 %v2958
    %v3327 = vunpack.c.l.b16 %v2959
    %v3328 = vunpack.c.h.b16 %v2959
    %v3329 = vunpack.c.l.b16 %v2960
    %v3330 = vunpack.c.h.b16 %v2960
    %v3331 = vunpack.c.l.b16 %v2961
    %v3332 = vunpack.c.h.b16 %v2961
    %v3333 = vunpack.c.l.b16 %v2962
    %v3334 = vunpack.c.h.b16 %v2962
    %v3335 = vunpack.c.l.b16 %v2963
    %v3336 = vunpack.c.h.b16 %v2963
    %v3337 = vunpack.c.l.b16 %v2964
    %v3338 = vunpack.c.h.b16 %v2964
    %v3339 = vunpack.c.l.b16 %v2965
    %v3340 = vunpack.c.h.b16 %v2965
    %v3341 = vunpack.c.l.b16 %v2966
    %v3342 = vunpack.c.h.b16 %v2966
    %v3343 = vunpack.c.l.b16 %v2967
    %v3344 = vunpack.c.h.b16 %v2967
    %v3345 = vunpack.c.l.b16 %v2968
    %v3346 = vunpack.c.h.b16 %v2968
    %v3347 = vunpack.c.l.b16 %v2969
    %v3348 = vunpack.c.h.b16 %v2969
    %v3349 = vunpack.c.l.b16 %v2970
    %v3350 = vunpack.c.h.b16 %v2970
    %v3351 = vunpack.c.l.b16 %v2971
    %v3352 = vunpack.c.h.b16 %v2971
    %v3353 = vunpack.c.l.b16 %v2972
    %v3354 = vunpack.c.h.b16 %v2972
    %v3355 = vunpack.c.l.b16 %v2973
    %v3356 = vunpack.c.h.b16 %v2973
    %v3357 = vunpack.c.l.b16 %v2974
    %v3358 = vunpack.c.h.b16 %v2974
    %v3359 = vunpack.c.l.b16 %v2975
    %v3360 = vunpack.c.h.b16 %v2975
    %v3361 = vunpack.c.l.b16 %v2976
    %v3362 = vunpack.c.h.b16 %v2976
    %v3363 = vunpack.c.l.b16 %v2977
    %v3364 = vunpack.c.h.b16 %v2977
    %v3365 = vunpack.c.l.b16 %v2978
    %v3366 = vunpack.c.h.b16 %v2978
    %v3367 = vunpack.c.l.b16 %v2979
    %v3368 = vunpack.c.h.b16 %v2979
    %v3369 = vunpack.c.l.b16 %v2980
    %v3370 = vunpack.c.h.b16 %v2980
    %v3371 = vunpack.c.l.b16 %v2981
    %v3372 = vunpack.c.h.b16 %v2981
    %v3373 = vunpack.c.l.b16 %v2982
    %v3374 = vunpack.c.h.b16 %v2982
    %v3375 = vunpack.c.l.b16 %v2983
    %v3376 = vunpack.c.h.b16 %v2983
    %v3377 = vunpack.c.l.b16 %v2984
    %v3378 = vunpack.c.h.b16 %v2984
    %v3379 = vunpack.c.l.b16 %v2985
    %v3380 = vunpack.c.h.b16 %v2985
    %v3381 = vunpack.c.l.b16 %v2986
    %v3382 = vunpack.c.h.b16 %v2986
    %v3383 = vpack.c.b16 %v3129, %v3127
    %v3384 = vpack.c.b16 %v3130, %v3128
    %v3385 = vpack.c.b16 %v3133, %v3131
    %v3386 = vpack.c.b16 %v3134, %v3132
    %v3387 = vpack.c.b16 %v3137, %v3135
    %v3388 = vpack.c.b16 %v3138, %v3136
    %v3389 = vpack.c.b16 %v3141, %v3139
    %v3390 = vpack.c.b16 %v3142, %v3140
    %v3391 = vpack.c.b16 %v3145, %v3143
    %v3392 = vpack.c.b16 %v3146, %v3144
    %v3393 = vpack.c.b16 %v3149, %v3147
    %v3394 = vpack.c.b16 %v3150, %v3148
    %v3395 = vpack.c.b16 %v3153, %v3151
    %v3396 = vpack.c.b16 %v3154, %v3152
    %v3397 = vpack.c.b16 %v3157, %v3155
    %v3398 = vpack.c.b16 %v3158, %v3156
    %v3399 = vpack.c.b16 %v3161, %v3159
    %v3400 = vpack.c.b16 %v3162, %v3160
    %v3401 = vpack.c.b16 %v3165, %v3163
    %v3402 = vpack.c.b16 %v3166, %v3164
    %v3403 = vpack.c.b16 %v3169, %v3167
    %v3404 = vpack.c.b16 %v3170, %v3168
    %v3405 = vpack.c.b16 %v3173, %v3171
    %v3406 = vpack.c.b16 %v3174, %v3172
    %v3407 = vpack.c.b16 %v3177, %v3175
    %v3408 = vpack.c.b16 %v3178, %v3176
    %v3409 = vpack.c.b16 %v3181, %v3179
    %v3410 = vpack.c.b16 %v3182, %v3180
    %v3411 = vpack.c.b16 %v3185, %v3183
    %v3412 = vpack.c.b16 %v3186, %v3184
    %v3413 = vpack.c.b16 %v3189, %v3187
    %v3414 = vpack.c.b16 %v3190, %v3188
    %v3415 = vpack.c.b16 %v3193, %v3191
    %v3416 = vpack.c.b16 %v3194, %v3192
    %v3417 = vpack.c.b16 %v3197, %v3195
    %v3418 = vpack.c.b16 %v3198, %v3196
    %v3419 = vpack.c.b16 %v3201, %v3199
    %v3420 = vpack.c.b16 %v3202, %v3200
    %v3421 = vpack.c.b16 %v3205, %v3203
    %v3422 = vpack.c.b16 %v3206, %v3204
    %v3423 = vpack.c.b16 %v3209, %v3207
    %v3424 = vpack.c.b16 %v3210, %v3208
    %v3425 = vpack.c.b16 %v3213, %v3211
    %v3426 = vpack.c.b16 %v3214, %v3212
    %v3427 = vpack.c.b16 %v3217, %v3215
    %v3428 = vpack.c.b16 %v3218, %v3216
    %v3429 = vpack.c.b16 %v3221, %v3219
    %v3430 = vpack.c.b16 %v3222, %v3220
    %v3431 = vpack.c.b16 %v3225, %v3223
    %v3432 = vpack.c.b16 %v3226, %v3224
    %v3433 = vpack.c.b16 %v3229, %v3227
    %v3434 = vpack.c.b16 %v3230, %v3228
    %v3435 = vpack.c.b16 %v3233, %v3231
    %v3436 = vpack.c.b16 %v3234, %v3232
    %v3437 = vpack.c.b16 %v3237, %v3235
    %v3438 = vpack.c.b16 %v3238, %v3236
    %v3439 = vpack.c.b16 %v3241, %v3239
    %v3440 = vpack.c.b16 %v3242, %v3240
    %v3441 = vpack.c.b16 %v3245, %v3243
    %v3442 = vpack.c.b16 %v3246, %v3244
    %v3443 = vpack.c.b16 %v3249, %v3247
    %v3444 = vpack.c.b16 %v3250, %v3248
    %v3445 = vpack.c.b16 %v3253, %v3251
    %v3446 = vpack.c.b16 %v3254, %v3252
    %v3447 = vpack.c.b16 %v3257, %v3255
    %v3448 = vpack.c.b16 %v3258, %v3256
    %v3449 = vpack.c.b16 %v3261, %v3259
    %v3450 = vpack.c.b16 %v3262, %v3260
    %v3451 = vpack.c.b16 %v3265, %v3263
    %v3452 = vpack.c.b16 %v3266, %v3264
    %v3453 = vpack.c.b16 %v3269, %v3267
    %v3454 = vpack.c.b16 %v3270, %v3268
    %v3455 = vpack.c.b16 %v3273, %v3271
    %v3456 = vpack.c.b16 %v3274, %v3272
    %v3457 = vpack.c.b16 %v3277, %v3275
    %v3458 = vpack.c.b16 %v3278, %v3276
    %v3459 = vpack.c.b16 %v3281, %v3279
    %v3460 = vpack.c.b16 %v3282, %v3280
    %v3461 = vpack.c.b16 %v3285, %v3283
    %v3462 = vpack.c.b16 %v3286, %v3284
    %v3463 = vpack.c.b16 %v3289, %v3287
    %v3464 = vpack.c.b16 %v3290, %v3288
    %v3465 = vpack.c.b16 %v3293, %v3291
    %v3466 = vpack.c.b16 %v3294, %v3292
    %v3467 = vpack.c.b16 %v3297, %v3295
    %v3468 = vpack.c.b16 %v3298, %v3296
    %v3469 = vpack.c.b16 %v3301, %v3299
    %v3470 = vpack.c.b16 %v3302, %v3300
    %v3471 = vpack.c.b16 %v3305, %v3303
    %v3472 = vpack.c.b16 %v3306, %v3304
    %v3473 = vpack.c.b16 %v3309, %v3307
    %v3474 = vpack.c.b16 %v3310, %v3308
    %v3475 = vpack.c.b16 %v3313, %v3311
    %v3476 = vpack.c.b16 %v3314, %v3312
    %v3477 = vpack.c.b16 %v3317, %v3315
    %v3478 = vpack.c.b16 %v3318, %v3316
    %v3479 = vpack.c.b16 %v3321, %v3319
    %v3480 = vpack.c.b16 %v3322, %v3320
    %v3481 = vpack.c.b16 %v3325, %v3323
    %v3482 = vpack.c.b16 %v3326, %v3324
    %v3483 = vpack.c.b16 %v3329, %v3327
    %v3484 = vpack.c.b16 %v3330, %v3328
    %v3485 = vpack.c.b16 %v3333, %v3331
    %v3486 = vpack.c.b16 %v3334, %v3332
    %v3487 = vpack.c.b16 %v3337, %v3335
    %v3488 = vpack.c.b16 %v3338, %v3336
    %v3489 = vpack.c.b16 %v3341, %v3339
    %v3490 = vpack.c.b16 %v3342, %v3340
    %v3491 = vpack.c.b16 %v3345, %v3343
    %v3492 = vpack.c.b16 %v3346, %v3344
    %v3493 = vpack.c.b16 %v3349, %v3347
    %v3494 = vpack.c.b16 %v3350, %v3348
    %v3495 = vpack.c.b16 %v3353, %v3351
    %v3496 = vpack.c.b16 %v3354, %v3352
    %v3497 = vpack.c.b16 %v3357, %v3355
    %v3498 = vpack.c.b16 %v3358, %v3356
    %v3499 = vpack.c.b16 %v3361, %v3359
    %v3500 = vpack.c.b16 %v3362, %v3360
    %v3501 = vpack.c.b16 %v3365, %v3363
    %v3502 = vpack.c.b16 %v3366, %v3364
    %v3503 = vpack.c.b16 %v3369, %v3367
    %v3504 = vpack.c.b16 %v3370, %v3368
    %v3505 = vpack.c.b16 %v3373, %v3371
    %v3506 = vpack.c.b16 %v3374, %v3372
    %v3507 = vpack.c.b16 %v3377, %v3375
    %v3508 = vpack.c.b16 %v3378, %v3376
    %v3509 = vpack.c.b16 %v3381, %v3379
    %v3510 = vpack.c.b16 %v3382, %v3380
    %3639 = vmatprep.subr.bf16.mxu0 %v3384
    %3640 = vmatpush1.bf16.msra.mxu0 %v3383
    %3641 = vmatprep.subr.bf16.mxu0 %v3386
    %3642 = vmatpush1.bf16.msra.mxu0 %v3385
    %3643 = vmatprep.subr.bf16.mxu0 %v3388
    %3644 = vmatpush1.bf16.msra.mxu0 %v3387
    %3645 = vmatprep.subr.bf16.mxu0 %v3390
    %3646 = vmatpush1.bf16.msra.mxu0 %v3389
    %3647 = vmatprep.subr.bf16.mxu0 %v3392
    %3648 = vmatpush1.bf16.msra.mxu0 %v3391
    %3649 = vmatprep.subr.bf16.mxu0 %v3394
    %3650 = vmatpush1.bf16.msra.mxu0 %v3393
    %3651 = vmatprep.subr.bf16.mxu0 %v3396
    %3652 = vmatpush1.bf16.msra.mxu0 %v3395
    %3653 = vmatprep.subr.bf16.mxu0 %v3398
    %3654 = vmatpush1.bf16.msra.mxu0 %v3397
    %3655 = vmatprep.subr.bf16.mxu0 %v3400
    %3656 = vmatpush1.bf16.msra.mxu0 %v3399
    %3657 = vmatprep.subr.bf16.mxu0 %v3402
    %3658 = vmatpush1.bf16.msra.mxu0 %v3401
    %3659 = vmatprep.subr.bf16.mxu0 %v3404
    %3660 = vmatpush1.bf16.msra.mxu0 %v3403
    %3661 = vmatprep.subr.bf16.mxu0 %v3406
    %3662 = vmatpush1.bf16.msra.mxu0 %v3405
    %3663 = vmatprep.subr.bf16.mxu0 %v3408
    %3664 = vmatpush1.bf16.msra.mxu0 %v3407
    %3665 = vmatprep.subr.bf16.mxu0 %v3410
    %3666 = vmatpush1.bf16.msra.mxu0 %v3409
    %3667 = vmatprep.subr.bf16.mxu0 %v3412
    %3668 = vmatpush1.bf16.msra.mxu0 %v3411
    %3669 = vmatprep.subr.bf16.mxu0 %v3414
    %3670 = vmatpush1.bf16.msra.mxu0 %v3413
    %3671 = vmatprep.mubr.bf16.mxu0 %v2852
    %3672 = vmatmul.mubr.bf16.gmra.mrb[0].mxu0 %v2851
    %v3673 = vpop.f32.mrb[0].mxu0
    %v3674 = vadd.f32 %v2992, %v3673
    %v3675 = vpop.f32.mrb[0].mxu0
    %v3676 = vadd.f32 %v2996, %v3675
    %v3677 = vpop.f32.mrb[0].mxu0
    %v3678 = vpop.f32.mrb[0].mxu0
    %3679 = vdwg.mxu0
    %3680 = vmatprep.subr.bf16.mxu0 %v3416
    %3681 = vmatpush1.bf16.msra.mxu0 %v3415
    %3682 = vmatprep.subr.bf16.mxu0 %v3418
    %3683 = vmatpush1.bf16.msra.mxu0 %v3417
    %3684 = vmatprep.subr.bf16.mxu0 %v3420
    %3685 = vmatpush1.bf16.msra.mxu0 %v3419
    %3686 = vmatprep.subr.bf16.mxu0 %v3422
    %3687 = vmatpush1.bf16.msra.mxu0 %v3421
    %3688 = vmatprep.subr.bf16.mxu0 %v3424
    %3689 = vmatpush1.bf16.msra.mxu0 %v3423
    %3690 = vmatprep.subr.bf16.mxu0 %v3426
    %3691 = vmatpush1.bf16.msra.mxu0 %v3425
    %3692 = vmatprep.subr.bf16.mxu0 %v3428
    %3693 = vmatpush1.bf16.msra.mxu0 %v3427
    %3694 = vmatprep.subr.bf16.mxu0 %v3430
    %3695 = vmatpush1.bf16.msra.mxu0 %v3429
    %3696 = vmatprep.subr.bf16.mxu0 %v3432
    %3697 = vmatpush1.bf16.msra.mxu0 %v3431
    %3698 = vmatprep.subr.bf16.mxu0 %v3434
    %3699 = vmatpush1.bf16.msra.mxu0 %v3433
    %3700 = vmatprep.subr.bf16.mxu0 %v3436
    %3701 = vmatpush1.bf16.msra.mxu0 %v3435
    %3702 = vmatprep.subr.bf16.mxu0 %v3438
    %3703 = vmatpush1.bf16.msra.mxu0 %v3437
    %3704 = vmatprep.subr.bf16.mxu0 %v3440
    %3705 = vmatpush1.bf16.msra.mxu0 %v3439
    %3706 = vmatprep.subr.bf16.mxu0 %v3442
    %3707 = vmatpush1.bf16.msra.mxu0 %v3441
    %3708 = vmatprep.subr.bf16.mxu0 %v3444
    %3709 = vmatpush1.bf16.msra.mxu0 %v3443
    %3710 = vmatprep.subr.bf16.mxu0 %v3446
    %3711 = vmatpush1.bf16.msra.mxu0 %v3445
    %3712 = vmatprep.mubr.bf16.mxu0 %v2854
    %3713 = vmatmul.mubr.bf16.gmra.mrb[0].mxu0 %v2853
    %v3714 = vpop.f32.mrb[0].mxu0
    %v3715 = vadd.f32 %v3674, %v3714
    %v3716 = vpop.f32.mrb[0].mxu0
    %v3717 = vadd.f32 %v3676, %v3716
    %v3718 = vpop.f32.mrb[0].mxu0
    %v3719 = vpop.f32.mrb[0].mxu0
    %3720 = vdwg.mxu0
    %3721 = vmatprep.subr.bf16.mxu0 %v3448
    %3722 = vmatpush1.bf16.msra.mxu0 %v3447
    %3723 = vmatprep.subr.bf16.mxu0 %v3450
    %3724 = vmatpush1.bf16.msra.mxu0 %v3449
    %3725 = vmatprep.subr.bf16.mxu0 %v3452
    %3726 = vmatpush1.bf16.msra.mxu0 %v3451
    %3727 = vmatprep.subr.bf16.mxu0 %v3454
    %3728 = vmatpush1.bf16.msra.mxu0 %v3453
    %3729 = vmatprep.subr.bf16.mxu0 %v3456
    %3730 = vmatpush1.bf16.msra.mxu0 %v3455
    %3731 = vmatprep.subr.bf16.mxu0 %v3458
    %3732 = vmatpush1.bf16.msra.mxu0 %v3457
    %3733 = vmatprep.subr.bf16.mxu0 %v3460
    %3734 = vmatpush1.bf16.msra.mxu0 %v3459
    %3735 = vmatprep.subr.bf16.mxu0 %v3462
    %3736 = vmatpush1.bf16.msra.mxu0 %v3461
    %3737 = vmatprep.subr.bf16.mxu0 %v3464
    %3738 = vmatpush1.bf16.msra.mxu0 %v3463
    %3739 = vmatprep.subr.bf16.mxu0 %v3466
    %3740 = vmatpush1.bf16.msra.mxu0 %v3465
    %3741 = vmatprep.subr.bf16.mxu0 %v3468
    %3742 = vmatpush1.bf16.msra.mxu0 %v3467
    %3743 = vmatprep.subr.bf16.mxu0 %v3470
    %3744 = vmatpush1.bf16.msra.mxu0 %v3469
    %3745 = vmatprep.subr.bf16.mxu0 %v3472
    %3746 = vmatpush1.bf16.msra.mxu0 %v3471
    %3747 = vmatprep.subr.bf16.mxu0 %v3474
    %3748 = vmatpush1.bf16.msra.mxu0 %v3473
    %3749 = vmatprep.subr.bf16.mxu0 %v3476
    %3750 = vmatpush1.bf16.msra.mxu0 %v3475
    %3751 = vmatprep.subr.bf16.mxu0 %v3478
    %3752 = vmatpush1.bf16.msra.mxu0 %v3477
    %3753 = vmatprep.mubr.bf16.mxu0 %v2856
    %3754 = vmatmul.mubr.bf16.gmra.mrb[0].mxu0 %v2855
    %v3755 = vpop.f32.mrb[0].mxu0
    %v3756 = vadd.f32 %v3715, %v3755
    %v3757 = vpop.f32.mrb[0].mxu0
    %v3758 = vadd.f32 %v3717, %v3757
    %v3759 = vpop.f32.mrb[0].mxu0
    %v3760 = vpop.f32.mrb[0].mxu0
    %3761 = vdwg.mxu0
    %3762 = vmatprep.subr.bf16.mxu0 %v3480
    %3763 = vmatpush1.bf16.msra.mxu0 %v3479
    %3764 = vmatprep.subr.bf16.mxu0 %v3482
    %3765 = vmatpush1.bf16.msra.mxu0 %v3481
    %3766 = vmatprep.subr.bf16.mxu0 %v3484
    %3767 = vmatpush1.bf16.msra.mxu0 %v3483
    %3768 = vmatprep.subr.bf16.mxu0 %v3486
    %3769 = vmatpush1.bf16.msra.mxu0 %v3485
    %3770 = vmatprep.subr.bf16.mxu0 %v3488
    %3771 = vmatpush1.bf16.msra.mxu0 %v3487
    %3772 = vmatprep.subr.bf16.mxu0 %v3490
    %3773 = vmatpush1.bf16.msra.mxu0 %v3489
    %3774 = vmatprep.subr.bf16.mxu0 %v3492
    %3775 = vmatpush1.bf16.msra.mxu0 %v3491
    %3776 = vmatprep.subr.bf16.mxu0 %v3494
    %3777 = vmatpush1.bf16.msra.mxu0 %v3493
    %3778 = vmatprep.subr.bf16.mxu0 %v3496
    %3779 = vmatpush1.bf16.msra.mxu0 %v3495
    %3780 = vmatprep.subr.bf16.mxu0 %v3498
    %3781 = vmatpush1.bf16.msra.mxu0 %v3497
    %3782 = vmatprep.subr.bf16.mxu0 %v3500
    %3783 = vmatpush1.bf16.msra.mxu0 %v3499
    %3784 = vmatprep.subr.bf16.mxu0 %v3502
    %3785 = vmatpush1.bf16.msra.mxu0 %v3501
    %3786 = vmatprep.subr.bf16.mxu0 %v3504
    %3787 = vmatpush1.bf16.msra.mxu0 %v3503
    %3788 = vmatprep.subr.bf16.mxu0 %v3506
    %3789 = vmatpush1.bf16.msra.mxu0 %v3505
    %3790 = vmatprep.subr.bf16.mxu0 %v3508
    %3791 = vmatpush1.bf16.msra.mxu0 %v3507
    %3792 = vmatprep.subr.bf16.mxu0 %v3510
    %3793 = vmatpush1.bf16.msra.mxu0 %v3509
    %3794 = vmatprep.mubr.bf16.mxu0 %v2858
    %3795 = vmatmul.mubr.bf16.gmra.mrb[0].mxu0 %v2857
    %v3796 = vpop.f32.mrb[0].mxu0
    %v3797 = vadd.f32 %v3756, %v3796
    %v3798 = vpop.f32.mrb[0].mxu0
    %v3799 = vadd.f32 %v3758, %v3798
    %v3800 = vpop.f32.mrb[0].mxu0
    %v3801 = vpop.f32.mrb[0].mxu0
    %3802 = vdwg.mxu0
    %v3803 = vmax.f32 %v3797, 0.0
    %v3804 = vmax.f32 %v3799, 0.0
    %3805 = vst [vmem:[#allocation11] sm:$0xff] %v3803
    %3806 = vst [vmem:[#allocation11 + $0x8] sm:$0xff] %v3804
    // Predicated region
    $region42: #{m_k_model_forward.1} parent=1 // pred_check
      _
    $region43: #{m_k_model_forward.1} parent=1 // pred_check_branch
      %3808 = sbr.rel (0) target = $region45
    $region44: #{m_k_model_forward.1} parent=1 // pred_region
      %s3810 = ssub.s32 256, 256
      %3811 = vsyncadd [#allocation4], %s3810
      %s3813 = sshll.u32 [#allocation11], 4
      %s3814 = int_to_ptr.vmem [resolvable:$true] %s3813
      %3816 = dma.vmem_to_hbm [thread:$0]  %s3814, 256, %s5, [#allocation4]
    $region45: #{m_k_model_forward.1} parent=1 // pred_fallthru
      _
    // Predicated region
    $region46: #{m_k_model_forward.1} parent=1 // pred_check
      _
    $region47: #{m_k_model_forward.1} parent=1 // pred_check_branch
      %3818 = sbr.rel (0) target = $region49
    $region48: #{m_k_model_forward.1} parent=1 // pred_region
      %3819 = dma.done [#allocation4], 256
    $region49: #{m_k_model_forward.1} parent=1 // pred_fallthru
      _
    %3820 = vsyncpa [#allocation3], 1
    %3821 = vsyncpa [#allocation6], 1
    %3822 = vsyncpa [#allocation9], 1
    %3823 = vsyncpa [#allocation4], 1

</llo_original>
